<compile_context>
chip_gen: v7x
topology: tpu7x:2x2x1
jax: 0.10.0
libtpu: 0.0.40
codegen_flags: <defaults>
</compile_context>

<pallas_src>
import jax
import jax.numpy as jnp
import numpy as np
from jax import lax
from jax.experimental import pallas as pl
from jax.experimental.pallas import tpu as pltpu


def _tap_masks(H, W):
    """(9, H*W) float32 validity masks for the 9 conv taps (0 where the
    shifted source pixel falls outside the image)."""
    HW = H * W
    hh, ww = np.divmod(np.arange(HW), W)
    masks = np.zeros((9, HW), np.float32)
    for dy in range(3):
        for dx in range(3):
            src_h, src_w = hh + dy - 1, ww + dx - 1
            valid = (src_h >= 0) & (src_h < H) & (src_w >= 0) & (src_w < W)
            masks[dy * 3 + dx] = valid.astype(np.float32)
    return jnp.asarray(masks)


def _make_kernel(B, H, W, CP, Cout, inter):
    HW = H * W
    BHW = B * HW
    bf16 = jnp.bfloat16
    f32 = jnp.float32

    def kernel(x_ref, masks_ref, w1_ref, w2_ref, w3_ref,
               bn1s_ref, bn1b_ref, bn2s_ref, bn2b_ref,
               fc1_ref, fc2_ref, out_ref, patch_ref):

        def build_patch(y, C):
            """im2col of the (C, BHW) f32 activation `y` via XLU lane rolls +
            boundary masks; taps are written bf16 into patch_ref rows [0, 9*C).
            Rolls that wrap across rows / images are zeroed by the masks."""
            for dy in range(3):
                for dx in range(3):
                    k = dy * 3 + dx
                    d = (dy - 1) * W + (dx - 1)
                    if d == 0:                       # center tap: always valid
                        tap = y
                    else:
                        tap = pltpu.roll(y, shift=(-d) % BHW, axis=1)
                        tap = tap * masks_ref[k:k + 1, :]      # f32 VPU multiply
                    patch_ref[k * C:(k + 1) * C, :] = tap.astype(bf16)

        # ---- conv1: one bf16 MXU matmul over the whole B*HW lane axis ------
        build_patch(x_ref[...], CP)
        y1 = jnp.dot(w1_ref[...], patch_ref[0:9 * CP, :],
                     preferred_element_type=f32)               # (Cout, BHW) f32

        # ---- conv2 -> BN1 -> ReLU ------------------------------------------
        build_patch(y1, Cout)
        y2 = jnp.dot(w2_ref[...], patch_ref[0:9 * Cout, :],
                     preferred_element_type=f32)
        y2 = jnp.maximum(y2 * bn1s_ref[...] + bn1b_ref[...], 0.0)

        # ---- conv3 -> BN2 ----------------------------------------------------
        build_patch(y2, Cout)
        y3 = jnp.dot(w3_ref[...], patch_ref[0:9 * Cout, :],
                     preferred_element_type=f32)
        y3 = y3 * bn2s_ref[...] + bn2b_ref[...]

        # ---- SE + channel scale + residual + ReLU, per image ----------------
        # Per-image work uses lane-aligned static slices (HW % 128 == 0), so
        # these are plain vreg subsets: VPU/XLU/EUP only, no MXU, no relayout.
        inv_hw = 1.0 / HW
        for b in range(B):
            lo = b * HW
            hi = lo + HW
            y3b = y3[:, lo:hi]                                           # (Cout, HW)
            se = jnp.sum(y3b, axis=1, keepdims=True) * inv_hw            # (Cout, 1)
            h = jnp.maximum(
                jnp.sum(se * fc1_ref[...], axis=0, keepdims=True), 0.0)  # (1, inter)
            s = jax.nn.sigmoid(
                jnp.sum(fc2_ref[...] * h, axis=1, keepdims=True))        # (Cout, 1)
            out_ref[:, lo:hi] = jnp.maximum(
                y3b * s + y1[:, lo:hi], 0.0).astype(out_ref.dtype)

    return kernel


def _default_images_per_step(N):
    """Largest divisor of N that is <= 8 AND keeps grid >= 2 (v7x has two
    TensorCores); fall back to the largest divisor <= 8."""
    divisors = [d for d in range(1, min(8, N) + 1) if N % d == 0]
    keep_two_slices = [d for d in divisors if N // d >= 2]
    return max(keep_two_slices) if keep_two_slices else max(divisors)


def resebridge_forward(x_nchw, params, images_per_step=None):
    """x_nchw: (N, Cin, H, W) float32 -> (N, Cout, H, W) float32 (NCHW)."""
    N, Cin, H, W = x_nchw.shape
    Cout = params['w1'].shape[0]
    inter = params['fc1'].shape[0]
    HW = H * W
    assert HW % 128 == 0, "H*W must be a multiple of 128 lanes for this kernel"
    assert Cout % 8 == 0, "out_ch must be a multiple of 8 sublanes"

    B = _default_images_per_step(N) if images_per_step is None else int(images_per_step)
    assert N % B == 0, "batch must be divisible by images_per_step"
    BHW = B * HW

    # Input channels zero-padded to a multiple of 16 so the conv1 im2col rows
    # land on bf16 sublane-tile boundaries inside the shared patch scratch.
    CP = ((Cin + 15) // 16) * 16

    # ---- layout prep (cheap data movement, done once outside the kernel) ----
    x_cp = jnp.pad(x_nchw.astype(jnp.float32),
                   ((0, 0), (0, CP - Cin), (0, 0), (0, 0)))
    x_cp = jnp.transpose(x_cp, (1, 0, 2, 3)).reshape(CP, N * HW)   # lane = n*HW + hw

    def flat_w(w, ci_pad):   # OIHW -> bf16 (O, 9*ci_pad), K ordered (dy, dx, ci)
        o, ci = w.shape[0], w.shape[1]
        w = jnp.pad(w, ((0, 0), (0, ci_pad - ci), (0, 0), (0, 0)))
        return jnp.transpose(w, (0, 2, 3, 1)).reshape(o, 9 * ci_pad).astype(jnp.bfloat16)

    w1t = flat_w(params['w1'], CP)        # (Cout, 9*CP)
    w2t = flat_w(params['w2'], Cout)      # (Cout, 9*Cout)
    w3t = flat_w(params['w3'], Cout)
    bn1s = params['bn1_scale'].reshape(Cout, 1).astype(jnp.float32)
    bn1b = params['bn1_bias'].reshape(Cout, 1).astype(jnp.float32)
    bn2s = params['bn2_scale'].reshape(Cout, 1).astype(jnp.float32)
    bn2b = params['bn2_bias'].reshape(Cout, 1).astype(jnp.float32)
    fc1k = params['fc1'].T.astype(jnp.float32)    # (Cout, inter)
    fc2k = params['fc2'].astype(jnp.float32)      # (Cout, inter)
    masks = jnp.tile(_tap_masks(H, W), (1, B))    # (9, B*HW), tiled across images

    kernel = _make_kernel(B, H, W, CP, Cout, inter)
    cmap = lambda i: (0, 0)
    Krows = 9 * max(CP, Cout)                     # shared bf16 im2col scratch rows

    grid_spec = pltpu.PrefetchScalarGridSpec(
        num_scalar_prefetch=0,
        grid=(N // B,),
        in_specs=[
            pl.BlockSpec((CP, BHW), lambda i: (0, i)),      # input slab
            pl.BlockSpec((9, BHW), cmap),                   # tap masks
            pl.BlockSpec((Cout, 9 * CP), cmap),             # w1 (bf16)
            pl.BlockSpec((Cout, 9 * Cout), cmap),           # w2 (bf16)
            pl.BlockSpec((Cout, 9 * Cout), cmap),           # w3 (bf16)
            pl.BlockSpec((Cout, 1), cmap),                  # bn1 scale
            pl.BlockSpec((Cout, 1), cmap),                  # bn1 bias
            pl.BlockSpec((Cout, 1), cmap),                  # bn2 scale
            pl.BlockSpec((Cout, 1), cmap),                  # bn2 bias
            pl.BlockSpec((Cout, inter), cmap),              # fc1^T
            pl.BlockSpec((Cout, inter), cmap),              # fc2
        ],
        out_specs=pl.BlockSpec((Cout, BHW), lambda i: (0, i)),
        scratch_shapes=[pltpu.VMEM((Krows, BHW), jnp.bfloat16)],   # im2col patch
    )

    flops = 2 * N * HW * Cout * (9 * CP + 2 * 9 * Cout)
    bytes_accessed = (x_cp.size * 4 + masks.size * 4
                      + (w1t.size + w2t.size + w3t.size) * 2
                      + Cout * N * HW * 4)
    cost = pl.CostEstimate(flops=int(flops), transcendentals=int(N * Cout),
                           bytes_accessed=int(bytes_accessed))

    out_flat = pl.pallas_call(
        kernel,
        out_shape=jax.ShapeDtypeStruct((Cout, N * HW), jnp.float32),
        grid_spec=grid_spec,
        compiler_params=pltpu.CompilerParams(
            dimension_semantics=("parallel",)),
        cost_estimate=cost,
    )(x_cp, masks, w1t, w2t, w3t, bn1s, bn1b, bn2s, bn2b, fc1k, fc2k)

    return jnp.transpose(out_flat.reshape(Cout, N, H, W), (1, 0, 2, 3))


def init_params(key, in_ch, out_ch, reduction=16):
    """Parameters in PyTorch-native layouts (OIHW convs, (out,in) linears)."""
    inter = max(out_ch // reduction, 1)
    ks = jax.random.split(key, 13)
    eps = 1e-5

    def conv_w(k, cin, cout):      # OIHW
        return jax.random.normal(k, (cout, cin, 3, 3), jnp.float32) / jnp.sqrt(9.0 * cin)

    w1 = conv_w(ks[0], in_ch, out_ch)
    w2 = conv_w(ks[1], out_ch, out_ch)
    w3 = conv_w(ks[2], out_ch, out_ch)

    def bn(kg, kb, km, kv):        # eval-mode BN folded to scale/bias
        gamma = 1.0 + 0.1 * jax.random.normal(kg, (out_ch,), jnp.float32)
        beta = 0.1 * jax.random.normal(kb, (out_ch,), jnp.float32)
        mean = 0.1 * jax.random.normal(km, (out_ch,), jnp.float32)
        var = jnp.abs(1.0 + 0.1 * jax.random.normal(kv, (out_ch,), jnp.float32))
        scale = gamma / jnp.sqrt(var + eps)
        bias = beta - mean * scale
        return scale, bias

    bn1_scale, bn1_bias = bn(ks[3], ks[4], ks[5], ks[6])
    bn2_scale, bn2_bias = bn(ks[7], ks[8], ks[9], ks[10])

    # nn.Linear(ch, inter, bias=False).weight -> (inter, ch)
    # nn.Linear(inter, ch, bias=False).weight -> (ch, inter)
    fc1 = jax.random.normal(ks[11], (inter, out_ch), jnp.float32) / jnp.sqrt(out_ch)
    fc2 = jax.random.normal(ks[12], (out_ch, inter), jnp.float32) / jnp.sqrt(inter)

    return dict(w1=w1, w2=w2, w3=w3,
                bn1_scale=bn1_scale, bn1_bias=bn1_bias,
                bn2_scale=bn2_scale, bn2_bias=bn2_bias,
                fc1=fc1, fc2=fc2)


def forward_ref(x, p, conv_dtype=jnp.float32):
    """Pure-JAX NCHW reference mirroring the PyTorch forward exactly.
    `conv_dtype=bfloat16` mimics the kernel's MXU path (bf16 operands,
    f32 accumulation); everything else stays f32."""
    dn = ('NCHW', 'OIHW', 'NCHW')

    def conv(v, w):
        return lax.conv_general_dilated(
            v.astype(conv_dtype), w.astype(conv_dtype), (1, 1), 'SAME',
            dimension_numbers=dn, preferred_element_type=jnp.float32)

    init = conv(x, p['w1'])                              # conv1 used twice, same result
    y = conv(init, p['w2']) * p['bn1_scale'][None, :, None, None] + p['bn1_bias'][None, :, None, None]
    y = jnp.maximum(y, 0.0)
    y = conv(y, p['w3']) * p['bn2_scale'][None, :, None, None] + p['bn2_bias'][None, :, None, None]
    se = jnp.mean(y, axis=(2, 3))                        # (N, C)
    h = jnp.maximum(se @ p['fc1'].T, 0.0)                # (N, inter)
    s = jax.nn.sigmoid(h @ p['fc2'].T)                   # (N, C)
    y = y * s[:, :, None, None]
    return jnp.maximum(y + init, 0.0)


if __name__ == "__main__":
    key = jax.random.PRNGKey(0)
    kx, kp = jax.random.split(key)

    N, H, W = 2, 16, 16
    in_ch, out_ch, reduction = 4, 32, 16     # inter_ch = 2

    x = jax.random.normal(kx, (N, in_ch, H, W), jnp.float32)
    params = init_params(kp, in_ch, out_ch, reduction)

    ref_f32 = forward_ref(x, params)                                  # f32 convs
    ref_bf16 = forward_ref(x, params, conv_dtype=jnp.bfloat16)        # kernel's MXU path

    # default: B chosen to keep grid >= 2 (both v7x TensorCores busy)
    out = jax.block_until_ready(resebridge_forward(x, params))
    assert out.shape == (N, out_ch, H, W)
    err_bf = float(jnp.max(jnp.abs(out - ref_bf16)))
    err_fp = float(jnp.max(jnp.abs(out - ref_f32)))
    if err_bf > 1e-2:
        raise AssertionError(f"Pallas kernel mismatch vs bf16-conv reference: {err_bf}")
    if err_fp > 2e-1:
        raise AssertionError(f"Pallas kernel far from f32 reference: {err_fp}")

    # whole-batch variant (preferred on single-TensorCore v5e/v6e)
    out2 = jax.block_until_ready(resebridge_forward(x, params, images_per_step=N))
    err2 = float(jnp.max(jnp.abs(out2 - ref_bf16)))
    if err2 > 1e-2:
        raise AssertionError(f"Pallas kernel mismatch (B=N): {err2}")

    print("KERNEL_OK")
</pallas_src>

<mosaic_0001>
module attributes {stable_mosaic.version = 11 : i64} {
  func.func @kernel(%arg0: i32, %arg1: memref<16x256xf32, #tpu.memory_space<vmem>>, %arg2: memref<9x256xf32, #tpu.memory_space<vmem>>, %arg3: memref<32x144xbf16, #tpu.memory_space<vmem>>, %arg4: memref<32x288xbf16, #tpu.memory_space<vmem>>, %arg5: memref<32x288xbf16, #tpu.memory_space<vmem>>, %arg6: memref<32x1xf32, #tpu.memory_space<vmem>>, %arg7: memref<32x1xf32, #tpu.memory_space<vmem>>, %arg8: memref<32x1xf32, #tpu.memory_space<vmem>>, %arg9: memref<32x1xf32, #tpu.memory_space<vmem>>, %arg10: memref<32x2xf32, #tpu.memory_space<vmem>>, %arg11: memref<32x2xf32, #tpu.memory_space<vmem>>, %arg12: memref<32x256xf32, #tpu.memory_space<vmem>>, %arg13: memref<288x256xbf16, #tpu.memory_space<vmem>>) attributes {dimension_semantics = [#tpu.dimension_semantics<parallel>], iteration_bounds = array<i64: 2>, scalar_prefetch = 0 : i64, scratch_operands = 1 : i64, tpu.core_type = #tpu.core_type<tc>, window_params = [{transform_indices = @transform_0, window_bounds = array<i64: 16, 256>}, {pipeline_mode = #tpu.pipeline_mode<synchronous>, transform_indices = @transform_1, window_bounds = array<i64: 9, 256>}, {pipeline_mode = #tpu.pipeline_mode<synchronous>, transform_indices = @transform_2, window_bounds = array<i64: 32, 144>}, {pipeline_mode = #tpu.pipeline_mode<synchronous>, transform_indices = @transform_3, window_bounds = array<i64: 32, 288>}, {pipeline_mode = #tpu.pipeline_mode<synchronous>, transform_indices = @transform_4, window_bounds = array<i64: 32, 288>}, {pipeline_mode = #tpu.pipeline_mode<synchronous>, transform_indices = @transform_5, window_bounds = array<i64: 32, 1>}, {pipeline_mode = #tpu.pipeline_mode<synchronous>, transform_indices = @transform_6, window_bounds = array<i64: 32, 1>}, {pipeline_mode = #tpu.pipeline_mode<synchronous>, transform_indices = @transform_7, window_bounds = array<i64: 32, 1>}, {pipeline_mode = #tpu.pipeline_mode<synchronous>, transform_indices = @transform_8, window_bounds = array<i64: 32, 1>}, {pipeline_mode = #tpu.pipeline_mode<synchronous>, transform_indices = @transform_9, window_bounds = array<i64: 32, 2>}, {pipeline_mode = #tpu.pipeline_mode<synchronous>, transform_indices = @transform_10, window_bounds = array<i64: 32, 2>}, {transform_indices = @transform_11, window_bounds = array<i64: 32, 256>}]} {
    %c0 = arith.constant 0 : index
    %c0_0 = arith.constant 0 : index
    %0 = vector.load %arg1[%c0, %c0_0] : memref<16x256xf32, #tpu.memory_space<vmem>>, vector<16x256xf32>
    %c17_i32 = arith.constant 17 : i32
    %1 = tpu.dynamic_rotate %0 by %c17_i32 dim 1 : vector<16x256xf32>, i32 -> vector<16x256xf32>
    %c0_1 = arith.constant 0 : index
    %c0_2 = arith.constant 0 : index
    %2 = vector.load %arg2[%c0_1, %c0_2] : memref<9x256xf32, #tpu.memory_space<vmem>>, vector<1x256xf32>
    %3 = vector.broadcast %2 : vector<1x256xf32> to vector<16x256xf32>
    %4 = arith.mulf %1, %3 : vector<16x256xf32>
    %5 = arith.truncf %4 : vector<16x256xf32> to vector<16x256xbf16>
    %c0_3 = arith.constant 0 : index
    %c0_4 = arith.constant 0 : index
    %6 = vector.load %arg13[%c0_3, %c0_4] : memref<288x256xbf16, #tpu.memory_space<vmem>>, vector<16x256xbf16>
    tpu.vector_store %arg13[%c0_3, %c0_4], %5 {strides = array<i32>} : memref<288x256xbf16, #tpu.memory_space<vmem>>, vector<16x256xbf16>,
    %c16_i32 = arith.constant 16 : i32
    %7 = tpu.dynamic_rotate %0 by %c16_i32 dim 1 : vector<16x256xf32>, i32 -> vector<16x256xf32>
    %c1 = arith.constant 1 : index
    %c0_5 = arith.constant 0 : index
    %8 = vector.load %arg2[%c1, %c0_5] : memref<9x256xf32, #tpu.memory_space<vmem>>, vector<1x256xf32>
    %9 = vector.broadcast %8 : vector<1x256xf32> to vector<16x256xf32>
    %10 = arith.mulf %7, %9 : vector<16x256xf32>
    %11 = arith.truncf %10 : vector<16x256xf32> to vector<16x256xbf16>
    %c16 = arith.constant 16 : index
    %c0_6 = arith.constant 0 : index
    %12 = vector.load %arg13[%c16, %c0_6] : memref<288x256xbf16, #tpu.memory_space<vmem>>, vector<16x256xbf16>
    tpu.vector_store %arg13[%c16, %c0_6], %11 {strides = array<i32>} : memref<288x256xbf16, #tpu.memory_space<vmem>>, vector<16x256xbf16>,
    %c15_i32 = arith.constant 15 : i32
    %13 = tpu.dynamic_rotate %0 by %c15_i32 dim 1 : vector<16x256xf32>, i32 -> vector<16x256xf32>
    %c2 = arith.constant 2 : index
    %c0_7 = arith.constant 0 : index
    %14 = vector.load %arg2[%c2, %c0_7] : memref<9x256xf32, #tpu.memory_space<vmem>>, vector<1x256xf32>
    %15 = vector.broadcast %14 : vector<1x256xf32> to vector<16x256xf32>
    %16 = arith.mulf %13, %15 : vector<16x256xf32>
    %17 = arith.truncf %16 : vector<16x256xf32> to vector<16x256xbf16>
    %c32 = arith.constant 32 : index
    %c0_8 = arith.constant 0 : index
    %18 = vector.load %arg13[%c32, %c0_8] : memref<288x256xbf16, #tpu.memory_space<vmem>>, vector<16x256xbf16>
    tpu.vector_store %arg13[%c32, %c0_8], %17 {strides = array<i32>} : memref<288x256xbf16, #tpu.memory_space<vmem>>, vector<16x256xbf16>,
    %c1_i32 = arith.constant 1 : i32
    %19 = tpu.dynamic_rotate %0 by %c1_i32 dim 1 : vector<16x256xf32>, i32 -> vector<16x256xf32>
    %c3 = arith.constant 3 : index
    %c0_9 = arith.constant 0 : index
    %20 = vector.load %arg2[%c3, %c0_9] : memref<9x256xf32, #tpu.memory_space<vmem>>, vector<1x256xf32>
    %21 = vector.broadcast %20 : vector<1x256xf32> to vector<16x256xf32>
    %22 = arith.mulf %19, %21 : vector<16x256xf32>
    %23 = arith.truncf %22 : vector<16x256xf32> to vector<16x256xbf16>
    %c48 = arith.constant 48 : index
    %c0_10 = arith.constant 0 : index
    %24 = vector.load %arg13[%c48, %c0_10] : memref<288x256xbf16, #tpu.memory_space<vmem>>, vector<16x256xbf16>
    tpu.vector_store %arg13[%c48, %c0_10], %23 {strides = array<i32>} : memref<288x256xbf16, #tpu.memory_space<vmem>>, vector<16x256xbf16>,
    %25 = arith.truncf %0 : vector<16x256xf32> to vector<16x256xbf16>
    %c64 = arith.constant 64 : index
    %c0_11 = arith.constant 0 : index
    %26 = vector.load %arg13[%c64, %c0_11] : memref<288x256xbf16, #tpu.memory_space<vmem>>, vector<16x256xbf16>
    tpu.vector_store %arg13[%c64, %c0_11], %25 {strides = array<i32>} : memref<288x256xbf16, #tpu.memory_space<vmem>>, vector<16x256xbf16>,
    %c255_i32 = arith.constant 255 : i32
    %27 = tpu.dynamic_rotate %0 by %c255_i32 dim 1 : vector<16x256xf32>, i32 -> vector<16x256xf32>
    %c5 = arith.constant 5 : index
    %c0_12 = arith.constant 0 : index
    %28 = vector.load %arg2[%c5, %c0_12] : memref<9x256xf32, #tpu.memory_space<vmem>>, vector<1x256xf32>
    %29 = vector.broadcast %28 : vector<1x256xf32> to vector<16x256xf32>
    %30 = arith.mulf %27, %29 : vector<16x256xf32>
    %31 = arith.truncf %30 : vector<16x256xf32> to vector<16x256xbf16>
    %c80 = arith.constant 80 : index
    %c0_13 = arith.constant 0 : index
    %32 = vector.load %arg13[%c80, %c0_13] : memref<288x256xbf16, #tpu.memory_space<vmem>>, vector<16x256xbf16>
    tpu.vector_store %arg13[%c80, %c0_13], %31 {strides = array<i32>} : memref<288x256xbf16, #tpu.memory_space<vmem>>, vector<16x256xbf16>,
    %c241_i32 = arith.constant 241 : i32
    %33 = tpu.dynamic_rotate %0 by %c241_i32 dim 1 : vector<16x256xf32>, i32 -> vector<16x256xf32>
    %c6 = arith.constant 6 : index
    %c0_14 = arith.constant 0 : index
    %34 = vector.load %arg2[%c6, %c0_14] : memref<9x256xf32, #tpu.memory_space<vmem>>, vector<1x256xf32>
    %35 = vector.broadcast %34 : vector<1x256xf32> to vector<16x256xf32>
    %36 = arith.mulf %33, %35 : vector<16x256xf32>
    %37 = arith.truncf %36 : vector<16x256xf32> to vector<16x256xbf16>
    %c96 = arith.constant 96 : index
    %c0_15 = arith.constant 0 : index
    %38 = vector.load %arg13[%c96, %c0_15] : memref<288x256xbf16, #tpu.memory_space<vmem>>, vector<16x256xbf16>
    tpu.vector_store %arg13[%c96, %c0_15], %37 {strides = array<i32>} : memref<288x256xbf16, #tpu.memory_space<vmem>>, vector<16x256xbf16>,
    %c240_i32 = arith.constant 240 : i32
    %39 = tpu.dynamic_rotate %0 by %c240_i32 dim 1 : vector<16x256xf32>, i32 -> vector<16x256xf32>
    %c7 = arith.constant 7 : index
    %c0_16 = arith.constant 0 : index
    %40 = vector.load %arg2[%c7, %c0_16] : memref<9x256xf32, #tpu.memory_space<vmem>>, vector<1x256xf32>
    %41 = vector.broadcast %40 : vector<1x256xf32> to vector<16x256xf32>
    %42 = arith.mulf %39, %41 : vector<16x256xf32>
    %43 = arith.truncf %42 : vector<16x256xf32> to vector<16x256xbf16>
    %c112 = arith.constant 112 : index
    %c0_17 = arith.constant 0 : index
    %44 = vector.load %arg13[%c112, %c0_17] : memref<288x256xbf16, #tpu.memory_space<vmem>>, vector<16x256xbf16>
    tpu.vector_store %arg13[%c112, %c0_17], %43 {strides = array<i32>} : memref<288x256xbf16, #tpu.memory_space<vmem>>, vector<16x256xbf16>,
    %c239_i32 = arith.constant 239 : i32
    %45 = tpu.dynamic_rotate %0 by %c239_i32 dim 1 : vector<16x256xf32>, i32 -> vector<16x256xf32>
    %c8 = arith.constant 8 : index
    %c0_18 = arith.constant 0 : index
    %46 = vector.load %arg2[%c8, %c0_18] : memref<9x256xf32, #tpu.memory_space<vmem>>, vector<1x256xf32>
    %47 = vector.broadcast %46 : vector<1x256xf32> to vector<16x256xf32>
    %48 = arith.mulf %45, %47 : vector<16x256xf32>
    %49 = arith.truncf %48 : vector<16x256xf32> to vector<16x256xbf16>
    %c128 = arith.constant 128 : index
    %c0_19 = arith.constant 0 : index
    %50 = vector.load %arg13[%c128, %c0_19] : memref<288x256xbf16, #tpu.memory_space<vmem>>, vector<16x256xbf16>
    tpu.vector_store %arg13[%c128, %c0_19], %49 {strides = array<i32>} : memref<288x256xbf16, #tpu.memory_space<vmem>>, vector<16x256xbf16>,
    %c0_20 = arith.constant 0 : index
    %c0_21 = arith.constant 0 : index
    %51 = vector.load %arg3[%c0_20, %c0_21] : memref<32x144xbf16, #tpu.memory_space<vmem>>, vector<32x144xbf16>
    %c0_22 = arith.constant 0 : index
    %c0_23 = arith.constant 0 : index
    %52 = vector.load %arg13[%c0_22, %c0_23] : memref<288x256xbf16, #tpu.memory_space<vmem>>, vector<144x256xbf16>
    %cst = arith.constant dense<0.000000e+00> : vector<32x256xf32>
    %53 = tpu.matmul %51, %52, %cst {dimension_numbers = #tpu.dot_dimension_numbers<[1], [0], [0], [1], [0, 0, 1, 1], [], []>} : vector<32x144xbf16>, vector<144x256xbf16>, vector<32x256xf32> -> vector<32x256xf32>
    %c17_i32_24 = arith.constant 17 : i32
    %54 = tpu.dynamic_rotate %53 by %c17_i32_24 dim 1 : vector<32x256xf32>, i32 -> vector<32x256xf32>
    %c0_25 = arith.constant 0 : index
    %c0_26 = arith.constant 0 : index
    %55 = vector.load %arg2[%c0_25, %c0_26] : memref<9x256xf32, #tpu.memory_space<vmem>>, vector<1x256xf32>
    %56 = vector.broadcast %55 : vector<1x256xf32> to vector<32x256xf32>
    %57 = arith.mulf %54, %56 : vector<32x256xf32>
    %58 = arith.truncf %57 : vector<32x256xf32> to vector<32x256xbf16>
    %c0_27 = arith.constant 0 : index
    %c0_28 = arith.constant 0 : index
    %59 = vector.load %arg13[%c0_27, %c0_28] : memref<288x256xbf16, #tpu.memory_space<vmem>>, vector<32x256xbf16>
    tpu.vector_store %arg13[%c0_27, %c0_28], %58 {strides = array<i32>} : memref<288x256xbf16, #tpu.memory_space<vmem>>, vector<32x256xbf16>,
    %c16_i32_29 = arith.constant 16 : i32
    %60 = tpu.dynamic_rotate %53 by %c16_i32_29 dim 1 : vector<32x256xf32>, i32 -> vector<32x256xf32>
    %c1_30 = arith.constant 1 : index
    %c0_31 = arith.constant 0 : index
    %61 = vector.load %arg2[%c1_30, %c0_31] : memref<9x256xf32, #tpu.memory_space<vmem>>, vector<1x256xf32>
    %62 = vector.broadcast %61 : vector<1x256xf32> to vector<32x256xf32>
    %63 = arith.mulf %60, %62 : vector<32x256xf32>
    %64 = arith.truncf %63 : vector<32x256xf32> to vector<32x256xbf16>
    %c32_32 = arith.constant 32 : index
    %c0_33 = arith.constant 0 : index
    %65 = vector.load %arg13[%c32_32, %c0_33] : memref<288x256xbf16, #tpu.memory_space<vmem>>, vector<32x256xbf16>
    tpu.vector_store %arg13[%c32_32, %c0_33], %64 {strides = array<i32>} : memref<288x256xbf16, #tpu.memory_space<vmem>>, vector<32x256xbf16>,
    %c15_i32_34 = arith.constant 15 : i32
    %66 = tpu.dynamic_rotate %53 by %c15_i32_34 dim 1 : vector<32x256xf32>, i32 -> vector<32x256xf32>
    %c2_35 = arith.constant 2 : index
    %c0_36 = arith.constant 0 : index
    %67 = vector.load %arg2[%c2_35, %c0_36] : memref<9x256xf32, #tpu.memory_space<vmem>>, vector<1x256xf32>
    %68 = vector.broadcast %67 : vector<1x256xf32> to vector<32x256xf32>
    %69 = arith.mulf %66, %68 : vector<32x256xf32>
    %70 = arith.truncf %69 : vector<32x256xf32> to vector<32x256xbf16>
    %c64_37 = arith.constant 64 : index
    %c0_38 = arith.constant 0 : index
    %71 = vector.load %arg13[%c64_37, %c0_38] : memref<288x256xbf16, #tpu.memory_space<vmem>>, vector<32x256xbf16>
    tpu.vector_store %arg13[%c64_37, %c0_38], %70 {strides = array<i32>} : memref<288x256xbf16, #tpu.memory_space<vmem>>, vector<32x256xbf16>,
    %c1_i32_39 = arith.constant 1 : i32
    %72 = tpu.dynamic_rotate %53 by %c1_i32_39 dim 1 : vector<32x256xf32>, i32 -> vector<32x256xf32>
    %c3_40 = arith.constant 3 : index
    %c0_41 = arith.constant 0 : index
    %73 = vector.load %arg2[%c3_40, %c0_41] : memref<9x256xf32, #tpu.memory_space<vmem>>, vector<1x256xf32>
    %74 = vector.broadcast %73 : vector<1x256xf32> to vector<32x256xf32>
    %75 = arith.mulf %72, %74 : vector<32x256xf32>
    %76 = arith.truncf %75 : vector<32x256xf32> to vector<32x256xbf16>
    %c96_42 = arith.constant 96 : index
    %c0_43 = arith.constant 0 : index
    %77 = vector.load %arg13[%c96_42, %c0_43] : memref<288x256xbf16, #tpu.memory_space<vmem>>, vector<32x256xbf16>
    tpu.vector_store %arg13[%c96_42, %c0_43], %76 {strides = array<i32>} : memref<288x256xbf16, #tpu.memory_space<vmem>>, vector<32x256xbf16>,
    %78 = arith.truncf %53 : vector<32x256xf32> to vector<32x256xbf16>
    %c128_44 = arith.constant 128 : index
    %c0_45 = arith.constant 0 : index
    %79 = vector.load %arg13[%c128_44, %c0_45] : memref<288x256xbf16, #tpu.memory_space<vmem>>, vector<32x256xbf16>
    tpu.vector_store %arg13[%c128_44, %c0_45], %78 {strides = array<i32>} : memref<288x256xbf16, #tpu.memory_space<vmem>>, vector<32x256xbf16>,
    %c255_i32_46 = arith.constant 255 : i32
    %80 = tpu.dynamic_rotate %53 by %c255_i32_46 dim 1 : vector<32x256xf32>, i32 -> vector<32x256xf32>
    %c5_47 = arith.constant 5 : index
    %c0_48 = arith.constant 0 : index
    %81 = vector.load %arg2[%c5_47, %c0_48] : memref<9x256xf32, #tpu.memory_space<vmem>>, vector<1x256xf32>
    %82 = vector.broadcast %81 : vector<1x256xf32> to vector<32x256xf32>
    %83 = arith.mulf %80, %82 : vector<32x256xf32>
    %84 = arith.truncf %83 : vector<32x256xf32> to vector<32x256xbf16>
    %c160 = arith.constant 160 : index
    %c0_49 = arith.constant 0 : index
    %85 = vector.load %arg13[%c160, %c0_49] : memref<288x256xbf16, #tpu.memory_space<vmem>>, vector<32x256xbf16>
    tpu.vector_store %arg13[%c160, %c0_49], %84 {strides = array<i32>} : memref<288x256xbf16, #tpu.memory_space<vmem>>, vector<32x256xbf16>,
    %c241_i32_50 = arith.constant 241 : i32
    %86 = tpu.dynamic_rotate %53 by %c241_i32_50 dim 1 : vector<32x256xf32>, i32 -> vector<32x256xf32>
    %c6_51 = arith.constant 6 : index
    %c0_52 = arith.constant 0 : index
    %87 = vector.load %arg2[%c6_51, %c0_52] : memref<9x256xf32, #tpu.memory_space<vmem>>, vector<1x256xf32>
    %88 = vector.broadcast %87 : vector<1x256xf32> to vector<32x256xf32>
    %89 = arith.mulf %86, %88 : vector<32x256xf32>
    %90 = arith.truncf %89 : vector<32x256xf32> to vector<32x256xbf16>
    %c192 = arith.constant 192 : index
    %c0_53 = arith.constant 0 : index
    %91 = vector.load %arg13[%c192, %c0_53] : memref<288x256xbf16, #tpu.memory_space<vmem>>, vector<32x256xbf16>
    tpu.vector_store %arg13[%c192, %c0_53], %90 {strides = array<i32>} : memref<288x256xbf16, #tpu.memory_space<vmem>>, vector<32x256xbf16>,
    %c240_i32_54 = arith.constant 240 : i32
    %92 = tpu.dynamic_rotate %53 by %c240_i32_54 dim 1 : vector<32x256xf32>, i32 -> vector<32x256xf32>
    %c7_55 = arith.constant 7 : index
    %c0_56 = arith.constant 0 : index
    %93 = vector.load %arg2[%c7_55, %c0_56] : memref<9x256xf32, #tpu.memory_space<vmem>>, vector<1x256xf32>
    %94 = vector.broadcast %93 : vector<1x256xf32> to vector<32x256xf32>
    %95 = arith.mulf %92, %94 : vector<32x256xf32>
    %96 = arith.truncf %95 : vector<32x256xf32> to vector<32x256xbf16>
    %c224 = arith.constant 224 : index
    %c0_57 = arith.constant 0 : index
    %97 = vector.load %arg13[%c224, %c0_57] : memref<288x256xbf16, #tpu.memory_space<vmem>>, vector<32x256xbf16>
    tpu.vector_store %arg13[%c224, %c0_57], %96 {strides = array<i32>} : memref<288x256xbf16, #tpu.memory_space<vmem>>, vector<32x256xbf16>,
    %c239_i32_58 = arith.constant 239 : i32
    %98 = tpu.dynamic_rotate %53 by %c239_i32_58 dim 1 : vector<32x256xf32>, i32 -> vector<32x256xf32>
    %c8_59 = arith.constant 8 : index
    %c0_60 = arith.constant 0 : index
    %99 = vector.load %arg2[%c8_59, %c0_60] : memref<9x256xf32, #tpu.memory_space<vmem>>, vector<1x256xf32>
    %100 = vector.broadcast %99 : vector<1x256xf32> to vector<32x256xf32>
    %101 = arith.mulf %98, %100 : vector<32x256xf32>
    %102 = arith.truncf %101 : vector<32x256xf32> to vector<32x256xbf16>
    %c256 = arith.constant 256 : index
    %c0_61 = arith.constant 0 : index
    %103 = vector.load %arg13[%c256, %c0_61] : memref<288x256xbf16, #tpu.memory_space<vmem>>, vector<32x256xbf16>
    tpu.vector_store %arg13[%c256, %c0_61], %102 {strides = array<i32>} : memref<288x256xbf16, #tpu.memory_space<vmem>>, vector<32x256xbf16>,
    %c0_62 = arith.constant 0 : index
    %c0_63 = arith.constant 0 : index
    %104 = vector.load %arg4[%c0_62, %c0_63] : memref<32x288xbf16, #tpu.memory_space<vmem>>, vector<32x288xbf16>
    %c0_64 = arith.constant 0 : index
    %c0_65 = arith.constant 0 : index
    %105 = vector.load %arg13[%c0_64, %c0_65] : memref<288x256xbf16, #tpu.memory_space<vmem>>, vector<288x256xbf16>
    %cst_66 = arith.constant dense<0.000000e+00> : vector<32x256xf32>
    %106 = tpu.matmul %104, %105, %cst_66 {dimension_numbers = #tpu.dot_dimension_numbers<[1], [0], [0], [1], [0, 0, 1, 1], [], []>} : vector<32x288xbf16>, vector<288x256xbf16>, vector<32x256xf32> -> vector<32x256xf32>
    %c0_67 = arith.constant 0 : index
    %c0_68 = arith.constant 0 : index
    %107 = vector.load %arg6[%c0_67, %c0_68] : memref<32x1xf32, #tpu.memory_space<vmem>>, vector<32x1xf32>
    %108 = vector.broadcast %107 : vector<32x1xf32> to vector<32x256xf32>
    %109 = arith.mulf %106, %108 : vector<32x256xf32>
    %c0_69 = arith.constant 0 : index
    %c0_70 = arith.constant 0 : index
    %110 = vector.load %arg7[%c0_69, %c0_70] : memref<32x1xf32, #tpu.memory_space<vmem>>, vector<32x1xf32>
    %111 = vector.broadcast %110 : vector<32x1xf32> to vector<32x256xf32>
    %112 = arith.addf %109, %111 : vector<32x256xf32>
    %cst_71 = arith.constant 0.000000e+00 : f32
    %113 = vector.broadcast %cst_71 : f32 to vector<32x256xf32>
    %114 = arith.maximumf %112, %113 : vector<32x256xf32>
    %c17_i32_72 = arith.constant 17 : i32
    %115 = tpu.dynamic_rotate %114 by %c17_i32_72 dim 1 : vector<32x256xf32>, i32 -> vector<32x256xf32>
    %c0_73 = arith.constant 0 : index
    %c0_74 = arith.constant 0 : index
    %116 = vector.load %arg2[%c0_73, %c0_74] : memref<9x256xf32, #tpu.memory_space<vmem>>, vector<1x256xf32>
    %117 = vector.broadcast %116 : vector<1x256xf32> to vector<32x256xf32>
    %118 = arith.mulf %115, %117 : vector<32x256xf32>
    %119 = arith.truncf %118 : vector<32x256xf32> to vector<32x256xbf16>
    %c0_75 = arith.constant 0 : index
    %c0_76 = arith.constant 0 : index
    %120 = vector.load %arg13[%c0_75, %c0_76] : memref<288x256xbf16, #tpu.memory_space<vmem>>, vector<32x256xbf16>
    tpu.vector_store %arg13[%c0_75, %c0_76], %119 {strides = array<i32>} : memref<288x256xbf16, #tpu.memory_space<vmem>>, vector<32x256xbf16>,
    %c16_i32_77 = arith.constant 16 : i32
    %121 = tpu.dynamic_rotate %114 by %c16_i32_77 dim 1 : vector<32x256xf32>, i32 -> vector<32x256xf32>
    %c1_78 = arith.constant 1 : index
    %c0_79 = arith.constant 0 : index
    %122 = vector.load %arg2[%c1_78, %c0_79] : memref<9x256xf32, #tpu.memory_space<vmem>>, vector<1x256xf32>
    %123 = vector.broadcast %122 : vector<1x256xf32> to vector<32x256xf32>
    %124 = arith.mulf %121, %123 : vector<32x256xf32>
    %125 = arith.truncf %124 : vector<32x256xf32> to vector<32x256xbf16>
    %c32_80 = arith.constant 32 : index
    %c0_81 = arith.constant 0 : index
    %126 = vector.load %arg13[%c32_80, %c0_81] : memref<288x256xbf16, #tpu.memory_space<vmem>>, vector<32x256xbf16>
    tpu.vector_store %arg13[%c32_80, %c0_81], %125 {strides = array<i32>} : memref<288x256xbf16, #tpu.memory_space<vmem>>, vector<32x256xbf16>,
    %c15_i32_82 = arith.constant 15 : i32
    %127 = tpu.dynamic_rotate %114 by %c15_i32_82 dim 1 : vector<32x256xf32>, i32 -> vector<32x256xf32>
    %c2_83 = arith.constant 2 : index
    %c0_84 = arith.constant 0 : index
    %128 = vector.load %arg2[%c2_83, %c0_84] : memref<9x256xf32, #tpu.memory_space<vmem>>, vector<1x256xf32>
    %129 = vector.broadcast %128 : vector<1x256xf32> to vector<32x256xf32>
    %130 = arith.mulf %127, %129 : vector<32x256xf32>
    %131 = arith.truncf %130 : vector<32x256xf32> to vector<32x256xbf16>
    %c64_85 = arith.constant 64 : index
    %c0_86 = arith.constant 0 : index
    %132 = vector.load %arg13[%c64_85, %c0_86] : memref<288x256xbf16, #tpu.memory_space<vmem>>, vector<32x256xbf16>
    tpu.vector_store %arg13[%c64_85, %c0_86], %131 {strides = array<i32>} : memref<288x256xbf16, #tpu.memory_space<vmem>>, vector<32x256xbf16>,
    %c1_i32_87 = arith.constant 1 : i32
    %133 = tpu.dynamic_rotate %114 by %c1_i32_87 dim 1 : vector<32x256xf32>, i32 -> vector<32x256xf32>
    %c3_88 = arith.constant 3 : index
    %c0_89 = arith.constant 0 : index
    %134 = vector.load %arg2[%c3_88, %c0_89] : memref<9x256xf32, #tpu.memory_space<vmem>>, vector<1x256xf32>
    %135 = vector.broadcast %134 : vector<1x256xf32> to vector<32x256xf32>
    %136 = arith.mulf %133, %135 : vector<32x256xf32>
    %137 = arith.truncf %136 : vector<32x256xf32> to vector<32x256xbf16>
    %c96_90 = arith.constant 96 : index
    %c0_91 = arith.constant 0 : index
    %138 = vector.load %arg13[%c96_90, %c0_91] : memref<288x256xbf16, #tpu.memory_space<vmem>>, vector<32x256xbf16>
    tpu.vector_store %arg13[%c96_90, %c0_91], %137 {strides = array<i32>} : memref<288x256xbf16, #tpu.memory_space<vmem>>, vector<32x256xbf16>,
    %139 = arith.truncf %114 : vector<32x256xf32> to vector<32x256xbf16>
    %c128_92 = arith.constant 128 : index
    %c0_93 = arith.constant 0 : index
    %140 = vector.load %arg13[%c128_92, %c0_93] : memref<288x256xbf16, #tpu.memory_space<vmem>>, vector<32x256xbf16>
    tpu.vector_store %arg13[%c128_92, %c0_93], %139 {strides = array<i32>} : memref<288x256xbf16, #tpu.memory_space<vmem>>, vector<32x256xbf16>,
    %c255_i32_94 = arith.constant 255 : i32
    %141 = tpu.dynamic_rotate %114 by %c255_i32_94 dim 1 : vector<32x256xf32>, i32 -> vector<32x256xf32>
    %c5_95 = arith.constant 5 : index
    %c0_96 = arith.constant 0 : index
    %142 = vector.load %arg2[%c5_95, %c0_96] : memref<9x256xf32, #tpu.memory_space<vmem>>, vector<1x256xf32>
    %143 = vector.broadcast %142 : vector<1x256xf32> to vector<32x256xf32>
    %144 = arith.mulf %141, %143 : vector<32x256xf32>
    %145 = arith.truncf %144 : vector<32x256xf32> to vector<32x256xbf16>
    %c160_97 = arith.constant 160 : index
    %c0_98 = arith.constant 0 : index
    %146 = vector.load %arg13[%c160_97, %c0_98] : memref<288x256xbf16, #tpu.memory_space<vmem>>, vector<32x256xbf16>
    tpu.vector_store %arg13[%c160_97, %c0_98], %145 {strides = array<i32>} : memref<288x256xbf16, #tpu.memory_space<vmem>>, vector<32x256xbf16>,
    %c241_i32_99 = arith.constant 241 : i32
    %147 = tpu.dynamic_rotate %114 by %c241_i32_99 dim 1 : vector<32x256xf32>, i32 -> vector<32x256xf32>
    %c6_100 = arith.constant 6 : index
    %c0_101 = arith.constant 0 : index
    %148 = vector.load %arg2[%c6_100, %c0_101] : memref<9x256xf32, #tpu.memory_space<vmem>>, vector<1x256xf32>
    %149 = vector.broadcast %148 : vector<1x256xf32> to vector<32x256xf32>
    %150 = arith.mulf %147, %149 : vector<32x256xf32>
    %151 = arith.truncf %150 : vector<32x256xf32> to vector<32x256xbf16>
    %c192_102 = arith.constant 192 : index
    %c0_103 = arith.constant 0 : index
    %152 = vector.load %arg13[%c192_102, %c0_103] : memref<288x256xbf16, #tpu.memory_space<vmem>>, vector<32x256xbf16>
    tpu.vector_store %arg13[%c192_102, %c0_103], %151 {strides = array<i32>} : memref<288x256xbf16, #tpu.memory_space<vmem>>, vector<32x256xbf16>,
    %c240_i32_104 = arith.constant 240 : i32
    %153 = tpu.dynamic_rotate %114 by %c240_i32_104 dim 1 : vector<32x256xf32>, i32 -> vector<32x256xf32>
    %c7_105 = arith.constant 7 : index
    %c0_106 = arith.constant 0 : index
    %154 = vector.load %arg2[%c7_105, %c0_106] : memref<9x256xf32, #tpu.memory_space<vmem>>, vector<1x256xf32>
    %155 = vector.broadcast %154 : vector<1x256xf32> to vector<32x256xf32>
    %156 = arith.mulf %153, %155 : vector<32x256xf32>
    %157 = arith.truncf %156 : vector<32x256xf32> to vector<32x256xbf16>
    %c224_107 = arith.constant 224 : index
    %c0_108 = arith.constant 0 : index
    %158 = vector.load %arg13[%c224_107, %c0_108] : memref<288x256xbf16, #tpu.memory_space<vmem>>, vector<32x256xbf16>
    tpu.vector_store %arg13[%c224_107, %c0_108], %157 {strides = array<i32>} : memref<288x256xbf16, #tpu.memory_space<vmem>>, vector<32x256xbf16>,
    %c239_i32_109 = arith.constant 239 : i32
    %159 = tpu.dynamic_rotate %114 by %c239_i32_109 dim 1 : vector<32x256xf32>, i32 -> vector<32x256xf32>
    %c8_110 = arith.constant 8 : index
    %c0_111 = arith.constant 0 : index
    %160 = vector.load %arg2[%c8_110, %c0_111] : memref<9x256xf32, #tpu.memory_space<vmem>>, vector<1x256xf32>
    %161 = vector.broadcast %160 : vector<1x256xf32> to vector<32x256xf32>
    %162 = arith.mulf %159, %161 : vector<32x256xf32>
    %163 = arith.truncf %162 : vector<32x256xf32> to vector<32x256xbf16>
    %c256_112 = arith.constant 256 : index
    %c0_113 = arith.constant 0 : index
    %164 = vector.load %arg13[%c256_112, %c0_113] : memref<288x256xbf16, #tpu.memory_space<vmem>>, vector<32x256xbf16>
    tpu.vector_store %arg13[%c256_112, %c0_113], %163 {strides = array<i32>} : memref<288x256xbf16, #tpu.memory_space<vmem>>, vector<32x256xbf16>,
    %c0_114 = arith.constant 0 : index
    %c0_115 = arith.constant 0 : index
    %165 = vector.load %arg5[%c0_114, %c0_115] : memref<32x288xbf16, #tpu.memory_space<vmem>>, vector<32x288xbf16>
    %c0_116 = arith.constant 0 : index
    %c0_117 = arith.constant 0 : index
    %166 = vector.load %arg13[%c0_116, %c0_117] : memref<288x256xbf16, #tpu.memory_space<vmem>>, vector<288x256xbf16>
    %cst_118 = arith.constant dense<0.000000e+00> : vector<32x256xf32>
    %167 = tpu.matmul %165, %166, %cst_118 {dimension_numbers = #tpu.dot_dimension_numbers<[1], [0], [0], [1], [0, 0, 1, 1], [], []>} : vector<32x288xbf16>, vector<288x256xbf16>, vector<32x256xf32> -> vector<32x256xf32>
    %c0_119 = arith.constant 0 : index
    %c0_120 = arith.constant 0 : index
    %168 = vector.load %arg8[%c0_119, %c0_120] : memref<32x1xf32, #tpu.memory_space<vmem>>, vector<32x1xf32>
    %169 = vector.broadcast %168 : vector<32x1xf32> to vector<32x256xf32>
    %170 = arith.mulf %167, %169 : vector<32x256xf32>
    %c0_121 = arith.constant 0 : index
    %c0_122 = arith.constant 0 : index
    %171 = vector.load %arg9[%c0_121, %c0_122] : memref<32x1xf32, #tpu.memory_space<vmem>>, vector<32x1xf32>
    %172 = vector.broadcast %171 : vector<32x1xf32> to vector<32x256xf32>
    %173 = arith.addf %170, %172 : vector<32x256xf32>
    %cst_123 = arith.constant dense<0.000000e+00> : vector<32xf32>
    %174 = vector.multi_reduction <add>, %173, %cst_123 [1] : vector<32x256xf32> to vector<32xf32>
    %175 = vector.shape_cast %174 : vector<32xf32> to vector<32x1xf32>
    %cst_124 = arith.constant 3.906250e-03 : f32
    %176 = vector.broadcast %cst_124 : f32 to vector<32x1xf32>
    %177 = arith.mulf %175, %176 : vector<32x1xf32>
    %c0_125 = arith.constant 0 : index
    %c0_126 = arith.constant 0 : index
    %178 = vector.load %arg10[%c0_125, %c0_126] : memref<32x2xf32, #tpu.memory_space<vmem>>, vector<32x2xf32>
    %179 = vector.broadcast %177 : vector<32x1xf32> to vector<32x2xf32>
    %180 = arith.mulf %179, %178 : vector<32x2xf32>
    %cst_127 = arith.constant dense<0.000000e+00> : vector<2xf32>
    %181 = vector.multi_reduction <add>, %180, %cst_127 [0] : vector<32x2xf32> to vector<2xf32>
    %182 = vector.shape_cast %181 : vector<2xf32> to vector<1x2xf32>
    %cst_128 = arith.constant 0.000000e+00 : f32
    %183 = vector.broadcast %cst_128 : f32 to vector<1x2xf32>
    %184 = arith.maximumf %182, %183 : vector<1x2xf32>
    %c0_129 = arith.constant 0 : index
    %c0_130 = arith.constant 0 : index
    %185 = vector.load %arg11[%c0_129, %c0_130] : memref<32x2xf32, #tpu.memory_space<vmem>>, vector<32x2xf32>
    %186 = vector.broadcast %184 : vector<1x2xf32> to vector<32x2xf32>
    %187 = arith.mulf %185, %186 : vector<32x2xf32>
    %cst_131 = arith.constant dense<0.000000e+00> : vector<32xf32>
    %188 = vector.multi_reduction <add>, %187, %cst_131 [1] : vector<32x2xf32> to vector<32xf32>
    %189 = vector.shape_cast %188 : vector<32xf32> to vector<32x1xf32>
    %190 = arith.negf %189 : vector<32x1xf32>
    %191 = math.exp %190 : vector<32x1xf32>
    %cst_132 = arith.constant 1.000000e+00 : f32
    %192 = vector.broadcast %cst_132 : f32 to vector<32x1xf32>
    %193 = arith.addf %192, %191 : vector<32x1xf32>
    %194 = arith.divf %192, %193 : vector<32x1xf32>
    %195 = vector.broadcast %194 : vector<32x1xf32> to vector<32x256xf32>
    %196 = arith.mulf %173, %195 : vector<32x256xf32>
    %197 = arith.addf %196, %53 : vector<32x256xf32>
    %cst_133 = arith.constant 0.000000e+00 : f32
    %198 = vector.broadcast %cst_133 : f32 to vector<32x256xf32>
    %199 = arith.maximumf %197, %198 : vector<32x256xf32>
    %c0_134 = arith.constant 0 : index
    %c0_135 = arith.constant 0 : index
    %200 = vector.load %arg12[%c0_134, %c0_135] : memref<32x256xf32, #tpu.memory_space<vmem>>, vector<32x256xf32>
    tpu.vector_store %arg12[%c0_134, %c0_135], %199 {strides = array<i32>} : memref<32x256xf32, #tpu.memory_space<vmem>>, vector<32x256xf32>,
    return
  }
  func.func @transform_0(%arg0: i32) -> (i32, i32) {
    %c0_i32 = arith.constant 0 : i32
    %c0_i32_0 = arith.constant 0 : i32
    return %c0_i32, %arg0 : i32, i32
  }
  func.func @transform_1(%arg0: i32) -> (i32, i32) {
    %c0_i32 = arith.constant 0 : i32
    %c0_i32_0 = arith.constant 0 : i32
    %c0_i32_1 = arith.constant 0 : i32
    return %c0_i32, %c0_i32_0 : i32, i32
  }
  func.func @transform_2(%arg0: i32) -> (i32, i32) {
    %c0_i32 = arith.constant 0 : i32
    %c0_i32_0 = arith.constant 0 : i32
    %c0_i32_1 = arith.constant 0 : i32
    return %c0_i32, %c0_i32_0 : i32, i32
  }
  func.func @transform_3(%arg0: i32) -> (i32, i32) {
    %c0_i32 = arith.constant 0 : i32
    %c0_i32_0 = arith.constant 0 : i32
    %c0_i32_1 = arith.constant 0 : i32
    return %c0_i32, %c0_i32_0 : i32, i32
  }
  func.func @transform_4(%arg0: i32) -> (i32, i32) {
    %c0_i32 = arith.constant 0 : i32
    %c0_i32_0 = arith.constant 0 : i32
    %c0_i32_1 = arith.constant 0 : i32
    return %c0_i32, %c0_i32_0 : i32, i32
  }
  func.func @transform_5(%arg0: i32) -> (i32, i32) {
    %c0_i32 = arith.constant 0 : i32
    %c0_i32_0 = arith.constant 0 : i32
    %c0_i32_1 = arith.constant 0 : i32
    return %c0_i32, %c0_i32_0 : i32, i32
  }
  func.func @transform_6(%arg0: i32) -> (i32, i32) {
    %c0_i32 = arith.constant 0 : i32
    %c0_i32_0 = arith.constant 0 : i32
    %c0_i32_1 = arith.constant 0 : i32
    return %c0_i32, %c0_i32_0 : i32, i32
  }
  func.func @transform_7(%arg0: i32) -> (i32, i32) {
    %c0_i32 = arith.constant 0 : i32
    %c0_i32_0 = arith.constant 0 : i32
    %c0_i32_1 = arith.constant 0 : i32
    return %c0_i32, %c0_i32_0 : i32, i32
  }
  func.func @transform_8(%arg0: i32) -> (i32, i32) {
    %c0_i32 = arith.constant 0 : i32
    %c0_i32_0 = arith.constant 0 : i32
    %c0_i32_1 = arith.constant 0 : i32
    return %c0_i32, %c0_i32_0 : i32, i32
  }
  func.func @transform_9(%arg0: i32) -> (i32, i32) {
    %c0_i32 = arith.constant 0 : i32
    %c0_i32_0 = arith.constant 0 : i32
    %c0_i32_1 = arith.constant 0 : i32
    return %c0_i32, %c0_i32_0 : i32, i32
  }
  func.func @transform_10(%arg0: i32) -> (i32, i32) {
    %c0_i32 = arith.constant 0 : i32
    %c0_i32_0 = arith.constant 0 : i32
    %c0_i32_1 = arith.constant 0 : i32
    return %c0_i32, %c0_i32_0 : i32, i32
  }
  func.func @transform_11(%arg0: i32) -> (i32, i32) {
    %c0_i32 = arith.constant 0 : i32
    %c0_i32_0 = arith.constant 0 : i32
    return %c0_i32, %arg0 : i32, i32
  }
}

</mosaic_0001>

<llo_original>
// kernel: tpu_custom_call.1
$region0: #{tpu_custom_call.1}
  #allocation0 [shape = 'u32[]', space=smem, size = 0x4, offset = 0x4, fixed_abs, tag = 'smem constant byte address 0x4 - core index']
  #allocation1 [shape = 'u32[144,128]{1,0:T(1,128)}', space=vmem, size = 0x12000, scoped, tag = 'internal scratch']
  #allocation2 [shape = 'bf16[288,256]{1,0:T(16,128)(2,1)}', space=vmem, size = 0x24000, scoped, tag = 'scratch operand']
  %s0 = inlined_call_operand.vmem [shape: f32[16,512], index: 0, kind: input, shape index: {}]
  %s1 = inlined_call_operand.vmem [shape: f32[9,256], index: 1, kind: input, shape index: {}]
  %s2 = inlined_call_operand.hbm [shape: bf16[32,144], index: 2, kind: input, shape index: {}]
  %s3 = inlined_call_operand.vmem [shape: bf16[32,288], index: 3, kind: input, shape index: {}]
  %s4 = inlined_call_operand.vmem [shape: bf16[32,288], index: 4, kind: input, shape index: {}]
  %s5 = inlined_call_operand.vmem [shape: f32[32,1], index: 5, kind: input, shape index: {}]
  %s6 = inlined_call_operand.vmem [shape: f32[32,1], index: 6, kind: input, shape index: {}]
  %s7 = inlined_call_operand.vmem [shape: f32[32,1], index: 7, kind: input, shape index: {}]
  %s8 = inlined_call_operand.vmem [shape: f32[32,1], index: 8, kind: input, shape index: {}]
  %s9 = inlined_call_operand.vmem [shape: f32[32,2], index: 9, kind: input, shape index: {}]
  %s10 = inlined_call_operand.vmem [shape: f32[32,2], index: 10, kind: input, shape index: {}]
  %s11 = inlined_call_operand.hbm [shape: f32[32,512], index: 11, kind: output, shape index: {}]
  %s12 = sld [smem:[#allocation0]]
  $region104: #{tpu_custom_call.1} parent=0
    _
  %s14 = ssub.s32 1, %s12
  %s15 = scalar_select 0, %s14, %s12
  $region1: #{tpu_custom_call.1} parent=0
    #allocation3 [shape = 'u8[32768]{0}', space=vmem, size = 0x8000, scoped, tag = 'input window, operand 0']
    #allocation4 [shape = 'u8[16384]{0}', space=vmem, size = 0x4000, scoped, tag = 'input window, operand 2, single buffered']
    #allocation5 [shape = 's32[2]{0}', space=sflag, size = 0x8, scoped, tag = 'scoped memory for tpu_custom_call.1']
    #allocation6 [shape = 's32[2]{0}', space=sflag, size = 0x8, scoped, tag = 'scoped memory for tpu_custom_call.1']
    #allocation7 [shape = 'u8[65536]{0}', space=vmem, size = 0x10000, scoped, tag = 'output window, operand 0']
    %16 = vsyncpa [#allocation5], 0
    %17 = vsyncpa [#allocation6], 0
    %s18 = scalar_lea.sflag [#allocation6], 1
    %19 = vsyncpa %s18, 0
    loop: start=0, step=1, limit=4
    $region2: #{tpu_custom_call.1} parent=1 // loop_pre_header
      _
    $region3: #{tpu_custom_call.1} parent=1 // loop_header
      %s21 = sphi 0, %s25
      %p22 = scmp.ge.s32.totalorder %s21, 4
      %s31 = sphi 0, %s33
      %s34 = sphi 0, %s31
      %s35 = sphi 0, %s34
      %s51 = sphi 0, %s35
      %s55 = sphi 0, %s55
      %s57 = sphi 0, %s55
      %s58 = sphi 0, %s57
      %s72 = sphi 0, %s58
      %s76 = sphi 0, %s76
      %s78 = sphi 0, %s76
      %s79 = sphi 0, %s78
      %s93 = sphi 0, %s79
      %s97 = sphi 0, %s97
      %s99 = sphi 0, %s97
      %s100 = sphi 0, %s99
      %s114 = sphi 0, %s100
      %s118 = sphi 0, %s118
      %s120 = sphi 0, %s118
      %s121 = sphi 0, %s120
      %s135 = sphi 0, %s121
      %s139 = sphi 0, %s139
      %s141 = sphi 0, %s139
      %s142 = sphi 0, %s141
      %s156 = sphi 0, %s142
      %s160 = sphi 0, %s160
      %s162 = sphi 0, %s160
      %s163 = sphi 0, %s162
      %s177 = sphi 0, %s163
      %s181 = sphi 0, %s181
      %s183 = sphi 0, %s181
      %s184 = sphi 0, %s183
      %s198 = sphi 0, %s184
      %s202 = sphi 0, %s202
      %s204 = sphi 0, %s202
      %s205 = sphi 0, %s204
      %s219 = sphi 0, %s205
      %s223 = sphi 0, %s223
      %s225 = sphi 0, %s223
      %s226 = sphi 0, %s225
      %s240 = sphi 0, %s226
      %s244 = sphi 0, %s244
      %s246 = sphi 0, %s244
      %s247 = sphi 0, %s246
      %s261 = sphi 0, %s247
      %s267 = sphi 0, %s269
      %s270 = sphi 0, %s267
      %s271 = sphi 0, %s270
      %s287 = sphi 0, %s271
    $region4: #{tpu_custom_call.1} parent=1 // loop_header_branch
      %24 = sbr.rel (%p22) target = $region8
    $region5: #{tpu_custom_call.1} parent=1 // loop_body
      %s26 = ssub.s32 %s21, 1
      %s27 = ssub.s32 %s21, 2
      %s28 = sadd.s32 %s21, 1
      %s29 = ssub.s32 %s21, %s28
      %p30 = scmp.eq.s32.totalorder %s29, 0
      %s32 = sadd.s32 %s31, 1
      %s33 = scalar_select %p30, %s31, %s32
      %p36 = pneg %p30
      %p37 = scmp.eq.s32.totalorder %s21, 1
      %p38 = por %p36, %p37
      %p39 = scmp.ne.s32.totalorder %s31, %s34
      %p40 = scmp.eq.s32.totalorder %s21, 0
      %p41 = por %p39, %p40
      %p42 = scmp.ne.s32.totalorder %s31, %s34
      %p43 = scmp.eq.s32.totalorder %s26, 1
      %p44 = por %p42, %p43
      %p45 = scmp.ne.s32.totalorder %s34, %s35
      %p46 = scmp.eq.s32.totalorder %s26, 0
      %p47 = por %p45, %p46
      %p48 = scmp.ne.s32.totalorder %s34, %s35
      %p49 = scmp.eq.s32.totalorder %s27, 1
      %p50 = por %p48, %p49
      %p52 = scmp.ne.s32.totalorder %s35, %s51
      %p53 = scmp.eq.s32.totalorder %s27, 0
      %p54 = por %p52, %p53
      %s56 = sadd.s32 %s55, 1
      %p59 = scmp.eq.s32.totalorder %s21, 1
      %p60 = scmp.ne.s32.totalorder %s55, %s57
      %p61 = scmp.eq.s32.totalorder %s21, 0
      %p62 = por %p60, %p61
      %p63 = scmp.ne.s32.totalorder %s55, %s57
      %p64 = scmp.eq.s32.totalorder %s26, 1
      %p65 = por %p63, %p64
      %p66 = scmp.ne.s32.totalorder %s57, %s58
      %p67 = scmp.eq.s32.totalorder %s26, 0
      %p68 = por %p66, %p67
      %p69 = scmp.ne.s32.totalorder %s57, %s58
      %p70 = scmp.eq.s32.totalorder %s27, 1
      %p71 = por %p69, %p70
      %p73 = scmp.ne.s32.totalorder %s58, %s72
      %p74 = scmp.eq.s32.totalorder %s27, 0
      %p75 = por %p73, %p74
      %s77 = sadd.s32 %s76, 1
      %p80 = scmp.eq.s32.totalorder %s21, 1
      %p81 = scmp.ne.s32.totalorder %s76, %s78
      %p82 = scmp.eq.s32.totalorder %s21, 0
      %p83 = por %p81, %p82
      %p84 = scmp.ne.s32.totalorder %s76, %s78
      %p85 = scmp.eq.s32.totalorder %s26, 1
      %p86 = por %p84, %p85
      %p87 = scmp.ne.s32.totalorder %s78, %s79
      %p88 = scmp.eq.s32.totalorder %s26, 0
      %p89 = por %p87, %p88
      %p90 = scmp.ne.s32.totalorder %s78, %s79
      %p91 = scmp.eq.s32.totalorder %s27, 1
      %p92 = por %p90, %p91
      %p94 = scmp.ne.s32.totalorder %s79, %s93
      %p95 = scmp.eq.s32.totalorder %s27, 0
      %p96 = por %p94, %p95
      %s98 = sadd.s32 %s97, 1
      %p101 = scmp.eq.s32.totalorder %s21, 1
      %p102 = scmp.ne.s32.totalorder %s97, %s99
      %p103 = scmp.eq.s32.totalorder %s21, 0
      %p104 = por %p102, %p103
      %p105 = scmp.ne.s32.totalorder %s97, %s99
      %p106 = scmp.eq.s32.totalorder %s26, 1
      %p107 = por %p105, %p106
      %p108 = scmp.ne.s32.totalorder %s99, %s100
      %p109 = scmp.eq.s32.totalorder %s26, 0
      %p110 = por %p108, %p109
      %p111 = scmp.ne.s32.totalorder %s99, %s100
      %p112 = scmp.eq.s32.totalorder %s27, 1
      %p113 = por %p111, %p112
      %p115 = scmp.ne.s32.totalorder %s100, %s114
      %p116 = scmp.eq.s32.totalorder %s27, 0
      %p117 = por %p115, %p116
      %s119 = sadd.s32 %s118, 1
      %p122 = scmp.eq.s32.totalorder %s21, 1
      %p123 = scmp.ne.s32.totalorder %s118, %s120
      %p124 = scmp.eq.s32.totalorder %s21, 0
      %p125 = por %p123, %p124
      %p126 = scmp.ne.s32.totalorder %s118, %s120
      %p127 = scmp.eq.s32.totalorder %s26, 1
      %p128 = por %p126, %p127
      %p129 = scmp.ne.s32.totalorder %s120, %s121
      %p130 = scmp.eq.s32.totalorder %s26, 0
      %p131 = por %p129, %p130
      %p132 = scmp.ne.s32.totalorder %s120, %s121
      %p133 = scmp.eq.s32.totalorder %s27, 1
      %p134 = por %p132, %p133
      %p136 = scmp.ne.s32.totalorder %s121, %s135
      %p137 = scmp.eq.s32.totalorder %s27, 0
      %p138 = por %p136, %p137
      %s140 = sadd.s32 %s139, 1
      %p143 = scmp.eq.s32.totalorder %s21, 1
      %p144 = scmp.ne.s32.totalorder %s139, %s141
      %p145 = scmp.eq.s32.totalorder %s21, 0
      %p146 = por %p144, %p145
      %p147 = scmp.ne.s32.totalorder %s139, %s141
      %p148 = scmp.eq.s32.totalorder %s26, 1
      %p149 = por %p147, %p148
      %p150 = scmp.ne.s32.totalorder %s141, %s142
      %p151 = scmp.eq.s32.totalorder %s26, 0
      %p152 = por %p150, %p151
      %p153 = scmp.ne.s32.totalorder %s141, %s142
      %p154 = scmp.eq.s32.totalorder %s27, 1
      %p155 = por %p153, %p154
      %p157 = scmp.ne.s32.totalorder %s142, %s156
      %p158 = scmp.eq.s32.totalorder %s27, 0
      %p159 = por %p157, %p158
      %s161 = sadd.s32 %s160, 1
      %p164 = scmp.eq.s32.totalorder %s21, 1
      %p165 = scmp.ne.s32.totalorder %s160, %s162
      %p166 = scmp.eq.s32.totalorder %s21, 0
      %p167 = por %p165, %p166
      %p168 = scmp.ne.s32.totalorder %s160, %s162
      %p169 = scmp.eq.s32.totalorder %s26, 1
      %p170 = por %p168, %p169
      %p171 = scmp.ne.s32.totalorder %s162, %s163
      %p172 = scmp.eq.s32.totalorder %s26, 0
      %p173 = por %p171, %p172
      %p174 = scmp.ne.s32.totalorder %s162, %s163
      %p175 = scmp.eq.s32.totalorder %s27, 1
      %p176 = por %p174, %p175
      %p178 = scmp.ne.s32.totalorder %s163, %s177
      %p179 = scmp.eq.s32.totalorder %s27, 0
      %p180 = por %p178, %p179
      %s182 = sadd.s32 %s181, 1
      %p185 = scmp.eq.s32.totalorder %s21, 1
      %p186 = scmp.ne.s32.totalorder %s181, %s183
      %p187 = scmp.eq.s32.totalorder %s21, 0
      %p188 = por %p186, %p187
      %p189 = scmp.ne.s32.totalorder %s181, %s183
      %p190 = scmp.eq.s32.totalorder %s26, 1
      %p191 = por %p189, %p190
      %p192 = scmp.ne.s32.totalorder %s183, %s184
      %p193 = scmp.eq.s32.totalorder %s26, 0
      %p194 = por %p192, %p193
      %p195 = scmp.ne.s32.totalorder %s183, %s184
      %p196 = scmp.eq.s32.totalorder %s27, 1
      %p197 = por %p195, %p196
      %p199 = scmp.ne.s32.totalorder %s184, %s198
      %p200 = scmp.eq.s32.totalorder %s27, 0
      %p201 = por %p199, %p200
      %s203 = sadd.s32 %s202, 1
      %p206 = scmp.eq.s32.totalorder %s21, 1
      %p207 = scmp.ne.s32.totalorder %s202, %s204
      %p208 = scmp.eq.s32.totalorder %s21, 0
      %p209 = por %p207, %p208
      %p210 = scmp.ne.s32.totalorder %s202, %s204
      %p211 = scmp.eq.s32.totalorder %s26, 1
      %p212 = por %p210, %p211
      %p213 = scmp.ne.s32.totalorder %s204, %s205
      %p214 = scmp.eq.s32.totalorder %s26, 0
      %p215 = por %p213, %p214
      %p216 = scmp.ne.s32.totalorder %s204, %s205
      %p217 = scmp.eq.s32.totalorder %s27, 1
      %p218 = por %p216, %p217
      %p220 = scmp.ne.s32.totalorder %s205, %s219
      %p221 = scmp.eq.s32.totalorder %s27, 0
      %p222 = por %p220, %p221
      %s224 = sadd.s32 %s223, 1
      %p227 = scmp.eq.s32.totalorder %s21, 1
      %p228 = scmp.ne.s32.totalorder %s223, %s225
      %p229 = scmp.eq.s32.totalorder %s21, 0
      %p230 = por %p228, %p229
      %p231 = scmp.ne.s32.totalorder %s223, %s225
      %p232 = scmp.eq.s32.totalorder %s26, 1
      %p233 = por %p231, %p232
      %p234 = scmp.ne.s32.totalorder %s225, %s226
      %p235 = scmp.eq.s32.totalorder %s26, 0
      %p236 = por %p234, %p235
      %p237 = scmp.ne.s32.totalorder %s225, %s226
      %p238 = scmp.eq.s32.totalorder %s27, 1
      %p239 = por %p237, %p238
      %p241 = scmp.ne.s32.totalorder %s226, %s240
      %p242 = scmp.eq.s32.totalorder %s27, 0
      %p243 = por %p241, %p242
      %s245 = sadd.s32 %s244, 1
      %p248 = scmp.eq.s32.totalorder %s21, 1
      %p249 = scmp.ne.s32.totalorder %s244, %s246
      %p250 = scmp.eq.s32.totalorder %s21, 0
      %p251 = por %p249, %p250
      %p252 = scmp.ne.s32.totalorder %s244, %s246
      %p253 = scmp.eq.s32.totalorder %s26, 1
      %p254 = por %p252, %p253
      %p255 = scmp.ne.s32.totalorder %s246, %s247
      %p256 = scmp.eq.s32.totalorder %s26, 0
      %p257 = por %p255, %p256
      %p258 = scmp.ne.s32.totalorder %s246, %s247
      %p259 = scmp.eq.s32.totalorder %s27, 1
      %p260 = por %p258, %p259
      %p262 = scmp.ne.s32.totalorder %s247, %s261
      %p263 = scmp.eq.s32.totalorder %s27, 0
      %p264 = por %p262, %p263
      %s265 = ssub.s32 %s21, %s28
      %p266 = scmp.eq.s32.totalorder %s265, 0
      %s268 = sadd.s32 %s267, 1
      %s269 = scalar_select %p266, %s267, %s268
      %p272 = pneg %p266
      %p273 = scmp.eq.s32.totalorder %s21, 1
      %p274 = por %p272, %p273
      %p275 = scmp.ne.s32.totalorder %s267, %s270
      %p276 = scmp.eq.s32.totalorder %s21, 0
      %p277 = por %p275, %p276
      %p278 = scmp.ne.s32.totalorder %s267, %s270
      %p279 = scmp.eq.s32.totalorder %s26, 1
      %p280 = por %p278, %p279
      %p281 = scmp.ne.s32.totalorder %s270, %s271
      %p282 = scmp.eq.s32.totalorder %s26, 0
      %p283 = por %p281, %p282
      %p284 = scmp.ne.s32.totalorder %s270, %s271
      %p285 = scmp.eq.s32.totalorder %s27, 1
      %p286 = por %p284, %p285
      %p288 = scmp.ne.s32.totalorder %s271, %s287
      %p289 = scmp.eq.s32.totalorder %s27, 0
      %p290 = por %p288, %p289
      %p291 = scmp.le.s32.totalorder 1, %s21
      %p292 = scmp.lt.s32.totalorder %s21, 3
      %p293 = pnand %p291, %p292
      %p294 = pneg %p293
      // Predicated region
      $region9: #{tpu_custom_call.1} parent=5 // pred_check
        _
      $region10: #{tpu_custom_call.1} parent=5 // pred_check_branch
        %296 = sbr.rel (%p293) target = $region12
      $region11: #{tpu_custom_call.1} parent=5 // pred_region
        %s297 = ssub.s32 %s21, 1
        // Predicated region
        $region13: #{tpu_custom_call.1} parent=11 // pred_check
          %p298 = pneg %p68
        $region14: #{tpu_custom_call.1} parent=11 // pred_check_branch
          %300 = sbr.rel (%p298) target = $region16
        $region15: #{tpu_custom_call.1} parent=11 // pred_region
          _
        $region16: #{tpu_custom_call.1} parent=11 // pred_fallthru
          _
        // Predicated region
        $region17: #{tpu_custom_call.1} parent=11 // pred_check
          %p301 = pneg %p89
        $region18: #{tpu_custom_call.1} parent=11 // pred_check_branch
          %303 = sbr.rel (%p301) target = $region20
        $region19: #{tpu_custom_call.1} parent=11 // pred_region
          %s305 = ssub.s32 512, 512
          %306 = vsyncadd [#allocation5], %s305
          %s307 = sshll.u32 [#allocation4], 4
          %s308 = int_to_ptr.vmem [resolvable:$true] %s307
          %313 = dma.hbm_to_vmem [thread:$0]  %s2, 512, %s308, [#allocation5], 128, 128, 8
        $region20: #{tpu_custom_call.1} parent=11 // pred_fallthru
          _
        // Predicated region
        $region21: #{tpu_custom_call.1} parent=11 // pred_check
          %p314 = pneg %p110
        $region22: #{tpu_custom_call.1} parent=11 // pred_check_branch
          %316 = sbr.rel (%p314) target = $region24
        $region23: #{tpu_custom_call.1} parent=11 // pred_region
          _
        $region24: #{tpu_custom_call.1} parent=11 // pred_fallthru
          _
        // Predicated region
        $region25: #{tpu_custom_call.1} parent=11 // pred_check
          %p317 = pneg %p131
        $region26: #{tpu_custom_call.1} parent=11 // pred_check_branch
          %319 = sbr.rel (%p317) target = $region28
        $region27: #{tpu_custom_call.1} parent=11 // pred_region
          _
        $region28: #{tpu_custom_call.1} parent=11 // pred_fallthru
          _
        // Predicated region
        $region29: #{tpu_custom_call.1} parent=11 // pred_check
          %p320 = pneg %p152
        $region30: #{tpu_custom_call.1} parent=11 // pred_check_branch
          %322 = sbr.rel (%p320) target = $region32
        $region31: #{tpu_custom_call.1} parent=11 // pred_region
          _
        $region32: #{tpu_custom_call.1} parent=11 // pred_fallthru
          _
        // Predicated region
        $region33: #{tpu_custom_call.1} parent=11 // pred_check
          %p323 = pneg %p173
        $region34: #{tpu_custom_call.1} parent=11 // pred_check_branch
          %325 = sbr.rel (%p323) target = $region36
        $region35: #{tpu_custom_call.1} parent=11 // pred_region
          _
        $region36: #{tpu_custom_call.1} parent=11 // pred_fallthru
          _
        // Predicated region
        $region37: #{tpu_custom_call.1} parent=11 // pred_check
          %p326 = pneg %p194
        $region38: #{tpu_custom_call.1} parent=11 // pred_check_branch
          %328 = sbr.rel (%p326) target = $region40
        $region39: #{tpu_custom_call.1} parent=11 // pred_region
          _
        $region40: #{tpu_custom_call.1} parent=11 // pred_fallthru
          _
        // Predicated region
        $region41: #{tpu_custom_call.1} parent=11 // pred_check
          %p329 = pneg %p215
        $region42: #{tpu_custom_call.1} parent=11 // pred_check_branch
          %331 = sbr.rel (%p329) target = $region44
        $region43: #{tpu_custom_call.1} parent=11 // pred_region
          _
        $region44: #{tpu_custom_call.1} parent=11 // pred_fallthru
          _
        // Predicated region
        $region45: #{tpu_custom_call.1} parent=11 // pred_check
          %p332 = pneg %p236
        $region46: #{tpu_custom_call.1} parent=11 // pred_check_branch
          %334 = sbr.rel (%p332) target = $region48
        $region47: #{tpu_custom_call.1} parent=11 // pred_region
          _
        $region48: #{tpu_custom_call.1} parent=11 // pred_fallthru
          _
        // Predicated region
        $region49: #{tpu_custom_call.1} parent=11 // pred_check
          %p335 = pneg %p257
        $region50: #{tpu_custom_call.1} parent=11 // pred_check_branch
          %337 = sbr.rel (%p335) target = $region52
        $region51: #{tpu_custom_call.1} parent=11 // pred_region
          _
        $region52: #{tpu_custom_call.1} parent=11 // pred_fallthru
          _
      $region12: #{tpu_custom_call.1} parent=5 // pred_fallthru
        _
      %p338 = scmp.lt.s32.totalorder %s21, 2
      // Predicated region
      $region53: #{tpu_custom_call.1} parent=5 // pred_check
        %p339 = pneg %p338
      $region54: #{tpu_custom_call.1} parent=5 // pred_check_branch
        %341 = sbr.rel (%p339) target = $region56
      $region55: #{tpu_custom_call.1} parent=5 // pred_region
        // Predicated region
        $region57: #{tpu_custom_call.1} parent=55 // pred_check
          %p342 = pneg %p41
        $region58: #{tpu_custom_call.1} parent=55 // pred_check_branch
          %344 = sbr.rel (%p342) target = $region60
        $region59: #{tpu_custom_call.1} parent=55 // pred_region
          %s345 = sand.u32 %s31, 1
          %s346 = sand.u32 %s31, 1
          %s347 = smul.addr %s346, 32
          %s348 = scalar_lea.vmem [#allocation3], %s347
          %s349 = smul.u32 2, %s21
          %s350 = smul.addr %s349, 8
          %s351 = scalar_lea.vmem %s0, %s350
          // Predicated region
          $region61: #{tpu_custom_call.1} parent=59 // pred_check
            _
          $region62: #{tpu_custom_call.1} parent=59 // pred_check_branch
            %353 = sbr.rel (0) target = $region64
          $region63: #{tpu_custom_call.1} parent=59 // pred_region
            // Predicated region
            $region65: #{tpu_custom_call.1} parent=63 // pred_check
              _
            $region66: #{tpu_custom_call.1} parent=63 // pred_check_branch
              %355 = sbr.rel (0) target = $region68
            $region67: #{tpu_custom_call.1} parent=63 // pred_region
              loop: start=0, step=1, limit=1
              $region69: #{tpu_custom_call.1} parent=67 // loop_pre_header
                _
              $region70: #{tpu_custom_call.1} parent=67 // loop_header
                %s357 = sphi 0, %s361
                %p358 = scmp.ge.s32.totalorder %s357, 1
                %s362 = sphi %s351, %s351
                %s363 = sphi %s348, %s348
              $region71: #{tpu_custom_call.1} parent=67 // loop_header_branch
                %360 = sbr.rel (%p358) target = $region75
              $region72: #{tpu_custom_call.1} parent=67 // loop_body
                %v364 = vld [vmem:[%s362] sm:$0xff]
                %365 = vst [vmem:[%s363] sm:$0xff] %v364
                %v366 = vld [vmem:[%s362 + $0x8] sm:$0xff]
                %367 = vst [vmem:[%s363 + $0x8] sm:$0xff] %v366
                %v368 = vld [vmem:[%s362 + $0x20] sm:$0xff]
                %369 = vst [vmem:[%s363 + $0x10] sm:$0xff] %v368
                %v370 = vld [vmem:[%s362 + $0x28] sm:$0xff]
                %371 = vst [vmem:[%s363 + $0x18] sm:$0xff] %v370
              $region73: #{tpu_custom_call.1} parent=67 // loop_footer
                %s361 = sadd.s32 1, %s357
              $region74: #{tpu_custom_call.1} parent=67 // loop_footer_branch
                %356 = sbr.rel target = $region70
              $region75: #{tpu_custom_call.1} parent=67 // loop_exit
                _
            $region68: #{tpu_custom_call.1} parent=63 // pred_fallthru
              _
            // Predicated region
            $region76: #{tpu_custom_call.1} parent=63 // pred_check
              _
            $region77: #{tpu_custom_call.1} parent=63 // pred_check_branch
              %373 = sbr.rel target = $region79
            $region78: #{tpu_custom_call.1} parent=63 // pred_region
              _
            $region79: #{tpu_custom_call.1} parent=63 // pred_fallthru
              _
          $region64: #{tpu_custom_call.1} parent=59 // pred_fallthru
            _
          %374 = vnop
        $region60: #{tpu_custom_call.1} parent=55 // pred_fallthru
          _
      $region56: #{tpu_custom_call.1} parent=5 // pred_fallthru
        _
      %p375 = scmp.le.s32.totalorder 1, %s21
      %p376 = scmp.lt.s32.totalorder %s21, 3
      %p377 = pnand %p375, %p376
      %p378 = pneg %p377
      // Predicated region
      $region80: #{tpu_custom_call.1} parent=5 // pred_check
        _
      $region81: #{tpu_custom_call.1} parent=5 // pred_check_branch
        %380 = sbr.rel (%p377) target = $region83
      $region82: #{tpu_custom_call.1} parent=5 // pred_region
        %s381 = ssub.s32 %s21, 1
        %s382 = sand.u32 %s34, 1
        %s383 = sand.u32 %s34, 1
        %s384 = smul.addr %s383, 32
        %s385 = scalar_lea.vmem [#allocation3], %s384
        // Predicated region
        $region84: #{tpu_custom_call.1} parent=82 // pred_check
          %p386 = pneg %p47
        $region85: #{tpu_custom_call.1} parent=82 // pred_check_branch
          %388 = sbr.rel (%p386) target = $region87
        $region86: #{tpu_custom_call.1} parent=82 // pred_region
          _
        $region87: #{tpu_custom_call.1} parent=82 // pred_fallthru
          _
        // Predicated region
        $region88: #{tpu_custom_call.1} parent=82 // pred_check
          %p389 = pneg %p89
        $region89: #{tpu_custom_call.1} parent=82 // pred_check_branch
          %391 = sbr.rel (%p389) target = $region91
        $region90: #{tpu_custom_call.1} parent=82 // pred_region
          %392 = dma.done [#allocation5], 512
        $region91: #{tpu_custom_call.1} parent=82 // pred_fallthru
          _
        %s393 = sand.u32 %s34, 1
        %s394 = sand.u32 %s34, 1
        %s395 = smul.addr %s394, 32
        %s396 = scalar_lea.vmem [#allocation3], %s395
        %p397 = pneg %p47
        %p398 = pneg %p44
        %p399 = pneg %p68
        %p400 = pneg %p65
        %p401 = pneg %p89
        %p402 = pneg %p86
        %p403 = pneg %p110
        %p404 = pneg %p107
        %p405 = pneg %p131
        %p406 = pneg %p128
        %p407 = pneg %p152
        %p408 = pneg %p149
        %p409 = pneg %p173
        %p410 = pneg %p170
        %p411 = pneg %p194
        %p412 = pneg %p191
        %p413 = pneg %p215
        %p414 = pneg %p212
        %p415 = pneg %p236
        %p416 = pneg %p233
        %p417 = pneg %p257
        %p418 = pneg %p254
        %p419 = pneg %p283
        %p420 = pneg %p280
        %s421 = sand.u32 %s270, 1
        %s422 = scalar_lea.sflag [#allocation6], %s421
        %s423 = sand.u32 %s270, 1
        %s424 = smul.addr %s423, 64
        %s425 = scalar_lea.vmem [#allocation7], %s424
        %s426 = smul.u32 2, %s26
        %s427 = smul.u32 2, %s26
        %v429 = vld [vmem:[%s385] sm:$0xff]
        %v430 = vld [vmem:[%s385 + $0x8] sm:$0xff]
        %v431 = vld [vmem:[%s385 + $0x10] sm:$0xff]
        %v432 = vld [vmem:[%s385 + $0x18] sm:$0xff]
        %433 = vrot.lane.b32.xlu0 %v429, 17
        %v434 = vpop.permute.xlu0 %433
        %435 = vrot.lane.b32.xlu0 %v431, 17
        %v436 = vpop.permute.xlu0 %435
        %437 = vrot.lane.b32.xlu0 %v430, 17
        %v438 = vpop.permute.xlu0 %437
        %439 = vrot.lane.b32.xlu0 %v432, 17
        %v440 = vpop.permute.xlu0 %439
        %v441 = vlaneseq
        %v442 = vand.u32 %v441, 127
        %vm443 = vcmp.lt.s32.totalorder %v442, 17
        %v444 = vsel %vm443, %v434, %v438
        %v445 = vsel %vm443, %v436, %v440
        %v446 = vsel %vm443, %v438, %v434
        %v447 = vsel %vm443, %v440, %v436
        %v448 = vld [vmem:[%s1] ss:$8 sm:$0x3]
        %v450 = vlaneseq
        %v451 = vshrl.u32 %v450, 7
        %v452 = vsub.s32 0, %v451
        %v453 = vrot.slane %v448, %v452
        %v454 = vlaneseq
        %v455 = vshrl.u32 %v454, 7
        %v456 = vsub.s32 1, %v455
        %v457 = vrot.slane %v448, %v456
        %v460 = vmul.f32 %v446, %v453
        %v461 = vmul.f32 %v444, %v457
        %v462 = vmul.f32 %v447, %v453
        %v463 = vmul.f32 %v445, %v457
        %v464 = vpack.c.bf16 %v462, %v460
        %v465 = vpack.c.bf16 %v463, %v461
        %466 = vst [vmem:[#allocation2] sm:$0xff] %v464
        %467 = vst [vmem:[#allocation2 + $0x8] sm:$0xff] %v465
        %468 = vrot.lane.b32.xlu0 %v429, 16
        %v469 = vpop.permute.xlu0 %468
        %470 = vrot.lane.b32.xlu0 %v431, 16
        %v471 = vpop.permute.xlu0 %470
        %472 = vrot.lane.b32.xlu0 %v430, 16
        %v473 = vpop.permute.xlu0 %472
        %474 = vrot.lane.b32.xlu0 %v432, 16
        %v475 = vpop.permute.xlu0 %474
        %vm476 = vcmp.lt.s32.totalorder %v442, 16
        %v477 = vsel %vm476, %v469, %v473
        %v478 = vsel %vm476, %v471, %v475
        %v479 = vsel %vm476, %v473, %v469
        %v480 = vsel %vm476, %v475, %v471
        %s481 = scalar_lea.vmem %s1, 1
        %v482 = vld [vmem:[%s481] ss:$8 sm:$0x3]
        %v484 = vlaneseq
        %v485 = vshrl.u32 %v484, 7
        %v486 = vsub.s32 0, %v485
        %v487 = vrot.slane %v482, %v486
        %v488 = vlaneseq
        %v489 = vshrl.u32 %v488, 7
        %v490 = vsub.s32 1, %v489
        %v491 = vrot.slane %v482, %v490
        %v494 = vmul.f32 %v479, %v487
        %v495 = vmul.f32 %v477, %v491
        %v496 = vmul.f32 %v480, %v487
        %v497 = vmul.f32 %v478, %v491
        %v498 = vpack.c.bf16 %v496, %v494
        %v499 = vpack.c.bf16 %v497, %v495
        %500 = vst [vmem:[#allocation2 + $0x10] sm:$0xff] %v498
        %501 = vst [vmem:[#allocation2 + $0x18] sm:$0xff] %v499
        %502 = vrot.lane.b32.xlu0 %v429, 15
        %v503 = vpop.permute.xlu0 %502
        %504 = vrot.lane.b32.xlu0 %v431, 15
        %v505 = vpop.permute.xlu0 %504
        %506 = vrot.lane.b32.xlu0 %v430, 15
        %v507 = vpop.permute.xlu0 %506
        %508 = vrot.lane.b32.xlu0 %v432, 15
        %v509 = vpop.permute.xlu0 %508
        %vm510 = vcmp.lt.s32.totalorder %v442, 15
        %v511 = vsel %vm510, %v503, %v507
        %v512 = vsel %vm510, %v505, %v509
        %v513 = vsel %vm510, %v507, %v503
        %v514 = vsel %vm510, %v509, %v505
        %s515 = scalar_lea.vmem %s1, 2
        %v516 = vld [vmem:[%s515] ss:$8 sm:$0x3]
        %v518 = vlaneseq
        %v519 = vshrl.u32 %v518, 7
        %v520 = vsub.s32 0, %v519
        %v521 = vrot.slane %v516, %v520
        %v522 = vlaneseq
        %v523 = vshrl.u32 %v522, 7
        %v524 = vsub.s32 1, %v523
        %v525 = vrot.slane %v516, %v524
        %v528 = vmul.f32 %v513, %v521
        %v529 = vmul.f32 %v511, %v525
        %v530 = vmul.f32 %v514, %v521
        %v531 = vmul.f32 %v512, %v525
        %v532 = vpack.c.bf16 %v530, %v528
        %v533 = vpack.c.bf16 %v531, %v529
        %534 = vst [vmem:[#allocation2 + $0x20] sm:$0xff] %v532
        %535 = vst [vmem:[#allocation2 + $0x28] sm:$0xff] %v533
        %536 = vrot.lane.b32.xlu0 %v429, 1
        %v537 = vpop.permute.xlu0 %536
        %538 = vrot.lane.b32.xlu0 %v431, 1
        %v539 = vpop.permute.xlu0 %538
        %540 = vrot.lane.b32.xlu0 %v430, 1
        %v541 = vpop.permute.xlu0 %540
        %542 = vrot.lane.b32.xlu0 %v432, 1
        %v543 = vpop.permute.xlu0 %542
        %vm544 = vcmp.lt.s32.totalorder %v442, 1
        %v545 = vsel %vm544, %v537, %v541
        %v546 = vsel %vm544, %v539, %v543
        %v547 = vsel %vm544, %v541, %v537
        %v548 = vsel %vm544, %v543, %v539
        %s549 = scalar_lea.vmem %s1, 3
        %v550 = vld [vmem:[%s549] ss:$8 sm:$0x3]
        %v552 = vlaneseq
        %v553 = vshrl.u32 %v552, 7
        %v554 = vsub.s32 0, %v553
        %v555 = vrot.slane %v550, %v554
        %v556 = vlaneseq
        %v557 = vshrl.u32 %v556, 7
        %v558 = vsub.s32 1, %v557
        %v559 = vrot.slane %v550, %v558
        %v562 = vmul.f32 %v547, %v555
        %v563 = vmul.f32 %v545, %v559
        %v564 = vmul.f32 %v548, %v555
        %v565 = vmul.f32 %v546, %v559
        %v566 = vpack.c.bf16 %v564, %v562
        %v567 = vpack.c.bf16 %v565, %v563
        %568 = vst [vmem:[#allocation2 + $0x30] sm:$0xff] %v566
        %569 = vst [vmem:[#allocation2 + $0x38] sm:$0xff] %v567
        %v570 = vpack.c.bf16 %v431, %v429
        %v571 = vpack.c.bf16 %v432, %v430
        %572 = vst [vmem:[#allocation2 + $0x40] sm:$0xff] %v570
        %573 = vst [vmem:[#allocation2 + $0x48] sm:$0xff] %v571
        %574 = vrot.lane.b32.xlu0 %v429, 127
        %v575 = vpop.permute.xlu0 %574
        %576 = vrot.lane.b32.xlu0 %v431, 127
        %v577 = vpop.permute.xlu0 %576
        %578 = vrot.lane.b32.xlu0 %v430, 127
        %v579 = vpop.permute.xlu0 %578
        %580 = vrot.lane.b32.xlu0 %v432, 127
        %v581 = vpop.permute.xlu0 %580
        %vm582 = vcmp.lt.s32.totalorder %v442, 127
        %v583 = vsel %vm582, %v575, %v579
        %v584 = vsel %vm582, %v577, %v581
        %v585 = vsel %vm582, %v579, %v575
        %v586 = vsel %vm582, %v581, %v577
        %s587 = scalar_lea.vmem %s1, 5
        %v588 = vld [vmem:[%s587] ss:$8 sm:$0x3]
        %v590 = vlaneseq
        %v591 = vshrl.u32 %v590, 7
        %v592 = vsub.s32 0, %v591
        %v593 = vrot.slane %v588, %v592
        %v594 = vlaneseq
        %v595 = vshrl.u32 %v594, 7
        %v596 = vsub.s32 1, %v595
        %v597 = vrot.slane %v588, %v596
        %v600 = vmul.f32 %v583, %v593
        %v601 = vmul.f32 %v585, %v597
        %v602 = vmul.f32 %v584, %v593
        %v603 = vmul.f32 %v586, %v597
        %v604 = vpack.c.bf16 %v602, %v600
        %v605 = vpack.c.bf16 %v603, %v601
        %606 = vst [vmem:[#allocation2 + $0x50] sm:$0xff] %v604
        %607 = vst [vmem:[#allocation2 + $0x58] sm:$0xff] %v605
        %608 = vrot.lane.b32.xlu0 %v429, 113
        %v609 = vpop.permute.xlu0 %608
        %610 = vrot.lane.b32.xlu0 %v431, 113
        %v611 = vpop.permute.xlu0 %610
        %612 = vrot.lane.b32.xlu0 %v430, 113
        %v613 = vpop.permute.xlu0 %612
        %614 = vrot.lane.b32.xlu0 %v432, 113
        %v615 = vpop.permute.xlu0 %614
        %vm616 = vcmp.lt.s32.totalorder %v442, 113
        %v617 = vsel %vm616, %v609, %v613
        %v618 = vsel %vm616, %v611, %v615
        %v619 = vsel %vm616, %v613, %v609
        %v620 = vsel %vm616, %v615, %v611
        %s621 = scalar_lea.vmem %s1, 6
        %v622 = vld [vmem:[%s621] ss:$8 sm:$0x3]
        %v624 = vlaneseq
        %v625 = vshrl.u32 %v624, 7
        %v626 = vsub.s32 0, %v625
        %v627 = vrot.slane %v622, %v626
        %v628 = vlaneseq
        %v629 = vshrl.u32 %v628, 7
        %v630 = vsub.s32 1, %v629
        %v631 = vrot.slane %v622, %v630
        %v634 = vmul.f32 %v617, %v627
        %v635 = vmul.f32 %v619, %v631
        %v636 = vmul.f32 %v618, %v627
        %v637 = vmul.f32 %v620, %v631
        %v638 = vpack.c.bf16 %v636, %v634
        %v639 = vpack.c.bf16 %v637, %v635
        %640 = vst [vmem:[#allocation2 + $0x60] sm:$0xff] %v638
        %641 = vst [vmem:[#allocation2 + $0x68] sm:$0xff] %v639
        %642 = vrot.lane.b32.xlu0 %v429, 112
        %v643 = vpop.permute.xlu0 %642
        %644 = vrot.lane.b32.xlu0 %v431, 112
        %v645 = vpop.permute.xlu0 %644
        %646 = vrot.lane.b32.xlu0 %v430, 112
        %v647 = vpop.permute.xlu0 %646
        %648 = vrot.lane.b32.xlu0 %v432, 112
        %v649 = vpop.permute.xlu0 %648
        %vm650 = vcmp.lt.s32.totalorder %v442, 112
        %v651 = vsel %vm650, %v643, %v647
        %v652 = vsel %vm650, %v645, %v649
        %v653 = vsel %vm650, %v647, %v643
        %v654 = vsel %vm650, %v649, %v645
        %s655 = scalar_lea.vmem %s1, 7
        %v656 = vld [vmem:[%s655] ss:$8 sm:$0x3]
        %v658 = vlaneseq
        %v659 = vshrl.u32 %v658, 7
        %v660 = vsub.s32 0, %v659
        %v661 = vrot.slane %v656, %v660
        %v662 = vlaneseq
        %v663 = vshrl.u32 %v662, 7
        %v664 = vsub.s32 1, %v663
        %v665 = vrot.slane %v656, %v664
        %v668 = vmul.f32 %v651, %v661
        %v669 = vmul.f32 %v653, %v665
        %v670 = vmul.f32 %v652, %v661
        %v671 = vmul.f32 %v654, %v665
        %v672 = vpack.c.bf16 %v670, %v668
        %v673 = vpack.c.bf16 %v671, %v669
        %674 = vst [vmem:[#allocation2 + $0x70] sm:$0xff] %v672
        %675 = vst [vmem:[#allocation2 + $0x78] sm:$0xff] %v673
        %676 = vrot.lane.b32.xlu0 %v429, 111
        %v677 = vpop.permute.xlu0 %676
        %678 = vrot.lane.b32.xlu0 %v431, 111
        %v679 = vpop.permute.xlu0 %678
        %680 = vrot.lane.b32.xlu0 %v430, 111
        %v681 = vpop.permute.xlu0 %680
        %682 = vrot.lane.b32.xlu0 %v432, 111
        %v683 = vpop.permute.xlu0 %682
        %vm684 = vcmp.lt.s32.totalorder %v442, 111
        %v685 = vsel %vm684, %v677, %v681
        %v686 = vsel %vm684, %v679, %v683
        %v687 = vsel %vm684, %v681, %v677
        %v688 = vsel %vm684, %v683, %v679
        %s689 = scalar_lea.vmem %s1, 16
        %v690 = vld [vmem:[%s689] ss:$8 sm:$0x3]
        %v692 = vlaneseq
        %v693 = vshrl.u32 %v692, 7
        %v694 = vsub.s32 0, %v693
        %v695 = vrot.slane %v690, %v694
        %v696 = vlaneseq
        %v697 = vshrl.u32 %v696, 7
        %v698 = vsub.s32 1, %v697
        %v699 = vrot.slane %v690, %v698
        %v702 = vmul.f32 %v685, %v695
        %v703 = vmul.f32 %v687, %v699
        %v704 = vmul.f32 %v686, %v695
        %v705 = vmul.f32 %v688, %v699
        %v706 = vpack.c.bf16 %v704, %v702
        %v707 = vpack.c.bf16 %v705, %v703
        %708 = vst [vmem:[#allocation2 + $0x80] sm:$0xff] %v706
        %709 = vst [vmem:[#allocation2 + $0x88] sm:$0xff] %v707
        %v710 = vld [vmem:[#allocation4] sm:$0xff]
        %v711 = vld [vmem:[#allocation4 + $0x8] sm:$0xff]
        %v712 = vld [vmem:[#allocation4 + $0x10] sm:$0xff]
        %v713 = vld [vmem:[#allocation4 + $0x18] sm:$0xff]
        %v714 = vld [vmem:[#allocation2] sm:$0xff]
        %v715 = vld [vmem:[#allocation2 + $0x8] sm:$0xff]
        %v716 = vld [vmem:[#allocation2 + $0x10] sm:$0xff]
        %v717 = vld [vmem:[#allocation2 + $0x18] sm:$0xff]
        %v718 = vld [vmem:[#allocation2 + $0x20] sm:$0xff]
        %v719 = vld [vmem:[#allocation2 + $0x28] sm:$0xff]
        %v720 = vld [vmem:[#allocation2 + $0x30] sm:$0xff]
        %v721 = vld [vmem:[#allocation2 + $0x38] sm:$0xff]
        %v722 = vld [vmem:[#allocation2 + $0x40] sm:$0xff]
        %v723 = vld [vmem:[#allocation2 + $0x48] sm:$0xff]
        %v724 = vld [vmem:[#allocation2 + $0x50] sm:$0xff]
        %v725 = vld [vmem:[#allocation2 + $0x58] sm:$0xff]
        %v726 = vld [vmem:[#allocation2 + $0x60] sm:$0xff]
        %v727 = vld [vmem:[#allocation2 + $0x68] sm:$0xff]
        %v728 = vld [vmem:[#allocation2 + $0x70] sm:$0xff]
        %v729 = vld [vmem:[#allocation2 + $0x78] sm:$0xff]
        %v730 = vld [vmem:[#allocation2 + $0x80] sm:$0xff]
        %v731 = vld [vmem:[#allocation2 + $0x88] sm:$0xff]
        %v736 = vunpack.c.l.b16 %v710
        %v737 = vunpack.c.h.b16 %v710
        %v738 = vunpack.c.l.b16 %v711
        %v739 = vunpack.c.h.b16 %v711
        %v740 = vunpack.c.l.b16 %v712
        %v741 = vunpack.c.h.b16 %v712
        %v742 = vunpack.c.l.b16 %v713
        %v743 = vunpack.c.h.b16 %v713
        %v744 = vpack.c.b16 %v738, %v736
        %v745 = vpack.c.b16 %v739, %v737
        %v746 = vpack.c.b16 %v742, %v740
        %v747 = vpack.c.b16 %v743, %v741
        %vm750 = vcmask 130048
        %v752 = vsel %vm750, %v745, 0
        %v755 = vsel %vm750, %v747, 0
        %757 = vmatprep.subr.bf16.mxu0 %v715
        %758 = vmatpush1.bf16.msra.mxu0 %v714
        %759 = vmatprep.subr.bf16.mxu0 %v717
        %760 = vmatpush1.bf16.msra.mxu0 %v716
        %761 = vmatprep.subr.bf16.mxu0 %v719
        %762 = vmatpush1.bf16.msra.mxu0 %v718
        %763 = vmatprep.subr.bf16.mxu0 %v721
        %764 = vmatpush1.bf16.msra.mxu0 %v720
        %765 = vmatprep.subr.bf16.mxu0 %v723
        %766 = vmatpush1.bf16.msra.mxu0 %v722
        %767 = vmatprep.subr.bf16.mxu0 %v725
        %768 = vmatpush1.bf16.msra.mxu0 %v724
        %769 = vmatprep.subr.bf16.mxu0 %v727
        %770 = vmatpush1.bf16.msra.mxu0 %v726
        %771 = vmatprep.subr.bf16.mxu0 %v729
        %772 = vmatpush1.bf16.msra.mxu0 %v728
        %773 = vmatprep.subr.bf16.mxu0 %v731
        %774 = vmatpush1.bf16.msra.mxu0 %v730
        %775 = vmatprep.subr.bf16.mxu0 0
        %776 = vmatpush1.bf16.msra.mxu0 0
        %777 = vmatprep.subr.bf16.mxu0 0
        %778 = vmatpush1.bf16.msra.mxu0 0
        %779 = vmatprep.subr.bf16.mxu0 0
        %780 = vmatpush1.bf16.msra.mxu0 0
        %781 = vmatprep.subr.bf16.mxu0 0
        %782 = vmatpush1.bf16.msra.mxu0 0
        %783 = vmatprep.subr.bf16.mxu0 0
        %784 = vmatpush1.bf16.msra.mxu0 0
        %785 = vmatprep.subr.bf16.mxu0 0
        %786 = vmatpush1.bf16.msra.mxu0 0
        %787 = vmatprep.subr.bf16.mxu0 0
        %788 = vmatpush1.bf16.msra.mxu0 0
        %789 = vmatprep.mubr.bf16.mxu0 %v752
        %790 = vmatmul.mubr.bf16.gmra.mrb[0].mxu0 %v744
        %v791 = vpop.f32.mrb[0].mxu0
        %v792 = vadd.f32 0.0, %v791
        %v793 = vpop.f32.mrb[0].mxu0
        %v794 = vadd.f32 0.0, %v793
        %v795 = vpop.f32.mrb[0].mxu0
        %v796 = vadd.f32 0.0, %v795
        %v797 = vpop.f32.mrb[0].mxu0
        %v798 = vadd.f32 0.0, %v797
        %799 = vmatprep.mubr.bf16.mxu0 %v755
        %800 = vmatmul.mubr.bf16.gmra.mrb[0].mxu0 %v746
        %v801 = vpop.f32.mrb[0].mxu0
        %v802 = vadd.f32 0.0, %v801
        %v803 = vpop.f32.mrb[0].mxu0
        %v804 = vadd.f32 0.0, %v803
        %v805 = vpop.f32.mrb[0].mxu0
        %v806 = vadd.f32 0.0, %v805
        %v807 = vpop.f32.mrb[0].mxu0
        %v808 = vadd.f32 0.0, %v807
        %809 = vdwg.mxu0
        %810 = vrot.lane.b32.xlu0 %v792, 17
        %v811 = vpop.permute.xlu0 %810
        %812 = vrot.lane.b32.xlu0 %v796, 17
        %v813 = vpop.permute.xlu0 %812
        %814 = vrot.lane.b32.xlu0 %v802, 17
        %v815 = vpop.permute.xlu0 %814
        %816 = vrot.lane.b32.xlu0 %v806, 17
        %v817 = vpop.permute.xlu0 %816
        %818 = vrot.lane.b32.xlu0 %v794, 17
        %v819 = vpop.permute.xlu0 %818
        %820 = vrot.lane.b32.xlu0 %v798, 17
        %v821 = vpop.permute.xlu0 %820
        %822 = vrot.lane.b32.xlu0 %v804, 17
        %v823 = vpop.permute.xlu0 %822
        %824 = vrot.lane.b32.xlu0 %v808, 17
        %v825 = vpop.permute.xlu0 %824
        %v826 = vsel %vm443, %v811, %v819
        %v827 = vsel %vm443, %v813, %v821
        %v828 = vsel %vm443, %v815, %v823
        %v829 = vsel %vm443, %v817, %v825
        %v830 = vsel %vm443, %v819, %v811
        %v831 = vsel %vm443, %v821, %v813
        %v832 = vsel %vm443, %v823, %v815
        %v833 = vsel %vm443, %v825, %v817
        %v834 = vld [vmem:[%s1] ss:$8 sm:$0x3]
        %v836 = vlaneseq
        %v837 = vshrl.u32 %v836, 7
        %v838 = vsub.s32 0, %v837
        %v839 = vrot.slane %v834, %v838
        %v840 = vlaneseq
        %v841 = vshrl.u32 %v840, 7
        %v842 = vsub.s32 1, %v841
        %v843 = vrot.slane %v834, %v842
        %v846 = vmul.f32 %v830, %v839
        %v847 = vmul.f32 %v826, %v843
        %v848 = vmul.f32 %v831, %v839
        %v849 = vmul.f32 %v827, %v843
        %v850 = vmul.f32 %v832, %v839
        %v851 = vmul.f32 %v828, %v843
        %v852 = vmul.f32 %v833, %v839
        %v853 = vmul.f32 %v829, %v843
        %v854 = vpack.c.bf16 %v848, %v846
        %v855 = vpack.c.bf16 %v849, %v847
        %v856 = vpack.c.bf16 %v852, %v850
        %v857 = vpack.c.bf16 %v853, %v851
        %858 = vst [vmem:[#allocation2] sm:$0xff] %v854
        %859 = vst [vmem:[#allocation2 + $0x8] sm:$0xff] %v855
        %860 = vst [vmem:[#allocation2 + $0x10] sm:$0xff] %v856
        %861 = vst [vmem:[#allocation2 + $0x18] sm:$0xff] %v857
        %862 = vrot.lane.b32.xlu0 %v792, 16
        %v863 = vpop.permute.xlu0 %862
        %864 = vrot.lane.b32.xlu0 %v796, 16
        %v865 = vpop.permute.xlu0 %864
        %866 = vrot.lane.b32.xlu0 %v802, 16
        %v867 = vpop.permute.xlu0 %866
        %868 = vrot.lane.b32.xlu0 %v806, 16
        %v869 = vpop.permute.xlu0 %868
        %870 = vrot.lane.b32.xlu0 %v794, 16
        %v871 = vpop.permute.xlu0 %870
        %872 = vrot.lane.b32.xlu0 %v798, 16
        %v873 = vpop.permute.xlu0 %872
        %874 = vrot.lane.b32.xlu0 %v804, 16
        %v875 = vpop.permute.xlu0 %874
        %876 = vrot.lane.b32.xlu0 %v808, 16
        %v877 = vpop.permute.xlu0 %876
        %v878 = vsel %vm476, %v863, %v871
        %v879 = vsel %vm476, %v865, %v873
        %v880 = vsel %vm476, %v867, %v875
        %v881 = vsel %vm476, %v869, %v877
        %v882 = vsel %vm476, %v871, %v863
        %v883 = vsel %vm476, %v873, %v865
        %v884 = vsel %vm476, %v875, %v867
        %v885 = vsel %vm476, %v877, %v869
        %v886 = vld [vmem:[%s481] ss:$8 sm:$0x3]
        %v888 = vlaneseq
        %v889 = vshrl.u32 %v888, 7
        %v890 = vsub.s32 0, %v889
        %v891 = vrot.slane %v886, %v890
        %v892 = vlaneseq
        %v893 = vshrl.u32 %v892, 7
        %v894 = vsub.s32 1, %v893
        %v895 = vrot.slane %v886, %v894
        %v898 = vmul.f32 %v882, %v891
        %v899 = vmul.f32 %v878, %v895
        %v900 = vmul.f32 %v883, %v891
        %v901 = vmul.f32 %v879, %v895
        %v902 = vmul.f32 %v884, %v891
        %v903 = vmul.f32 %v880, %v895
        %v904 = vmul.f32 %v885, %v891
        %v905 = vmul.f32 %v881, %v895
        %v906 = vpack.c.bf16 %v900, %v898
        %v907 = vpack.c.bf16 %v901, %v899
        %v908 = vpack.c.bf16 %v904, %v902
        %v909 = vpack.c.bf16 %v905, %v903
        %910 = vst [vmem:[#allocation2 + $0x20] sm:$0xff] %v906
        %911 = vst [vmem:[#allocation2 + $0x28] sm:$0xff] %v907
        %912 = vst [vmem:[#allocation2 + $0x30] sm:$0xff] %v908
        %913 = vst [vmem:[#allocation2 + $0x38] sm:$0xff] %v909
        %914 = vrot.lane.b32.xlu0 %v792, 15
        %v915 = vpop.permute.xlu0 %914
        %916 = vrot.lane.b32.xlu0 %v796, 15
        %v917 = vpop.permute.xlu0 %916
        %918 = vrot.lane.b32.xlu0 %v802, 15
        %v919 = vpop.permute.xlu0 %918
        %920 = vrot.lane.b32.xlu0 %v806, 15
        %v921 = vpop.permute.xlu0 %920
        %922 = vrot.lane.b32.xlu0 %v794, 15
        %v923 = vpop.permute.xlu0 %922
        %924 = vrot.lane.b32.xlu0 %v798, 15
        %v925 = vpop.permute.xlu0 %924
        %926 = vrot.lane.b32.xlu0 %v804, 15
        %v927 = vpop.permute.xlu0 %926
        %928 = vrot.lane.b32.xlu0 %v808, 15
        %v929 = vpop.permute.xlu0 %928
        %v930 = vsel %vm510, %v915, %v923
        %v931 = vsel %vm510, %v917, %v925
        %v932 = vsel %vm510, %v919, %v927
        %v933 = vsel %vm510, %v921, %v929
        %v934 = vsel %vm510, %v923, %v915
        %v935 = vsel %vm510, %v925, %v917
        %v936 = vsel %vm510, %v927, %v919
        %v937 = vsel %vm510, %v929, %v921
        %v938 = vld [vmem:[%s515] ss:$8 sm:$0x3]
        %v940 = vlaneseq
        %v941 = vshrl.u32 %v940, 7
        %v942 = vsub.s32 0, %v941
        %v943 = vrot.slane %v938, %v942
        %v944 = vlaneseq
        %v945 = vshrl.u32 %v944, 7
        %v946 = vsub.s32 1, %v945
        %v947 = vrot.slane %v938, %v946
        %v950 = vmul.f32 %v934, %v943
        %v951 = vmul.f32 %v930, %v947
        %v952 = vmul.f32 %v935, %v943
        %v953 = vmul.f32 %v931, %v947
        %v954 = vmul.f32 %v936, %v943
        %v955 = vmul.f32 %v932, %v947
        %v956 = vmul.f32 %v937, %v943
        %v957 = vmul.f32 %v933, %v947
        %v958 = vpack.c.bf16 %v952, %v950
        %v959 = vpack.c.bf16 %v953, %v951
        %v960 = vpack.c.bf16 %v956, %v954
        %v961 = vpack.c.bf16 %v957, %v955
        %962 = vst [vmem:[#allocation2 + $0x40] sm:$0xff] %v958
        %963 = vst [vmem:[#allocation2 + $0x48] sm:$0xff] %v959
        %964 = vst [vmem:[#allocation2 + $0x50] sm:$0xff] %v960
        %965 = vst [vmem:[#allocation2 + $0x58] sm:$0xff] %v961
        %966 = vrot.lane.b32.xlu0 %v792, 1
        %v967 = vpop.permute.xlu0 %966
        %968 = vrot.lane.b32.xlu0 %v796, 1
        %v969 = vpop.permute.xlu0 %968
        %970 = vrot.lane.b32.xlu0 %v802, 1
        %v971 = vpop.permute.xlu0 %970
        %972 = vrot.lane.b32.xlu0 %v806, 1
        %v973 = vpop.permute.xlu0 %972
        %974 = vrot.lane.b32.xlu0 %v794, 1
        %v975 = vpop.permute.xlu0 %974
        %976 = vrot.lane.b32.xlu0 %v798, 1
        %v977 = vpop.permute.xlu0 %976
        %978 = vrot.lane.b32.xlu0 %v804, 1
        %v979 = vpop.permute.xlu0 %978
        %980 = vrot.lane.b32.xlu0 %v808, 1
        %v981 = vpop.permute.xlu0 %980
        %v982 = vsel %vm544, %v967, %v975
        %v983 = vsel %vm544, %v969, %v977
        %v984 = vsel %vm544, %v971, %v979
        %v985 = vsel %vm544, %v973, %v981
        %v986 = vsel %vm544, %v975, %v967
        %v987 = vsel %vm544, %v977, %v969
        %v988 = vsel %vm544, %v979, %v971
        %v989 = vsel %vm544, %v981, %v973
        %v990 = vld [vmem:[%s549] ss:$8 sm:$0x3]
        %v992 = vlaneseq
        %v993 = vshrl.u32 %v992, 7
        %v994 = vsub.s32 0, %v993
        %v995 = vrot.slane %v990, %v994
        %v996 = vlaneseq
        %v997 = vshrl.u32 %v996, 7
        %v998 = vsub.s32 1, %v997
        %v999 = vrot.slane %v990, %v998
        %v1002 = vmul.f32 %v986, %v995
        %v1003 = vmul.f32 %v982, %v999
        %v1004 = vmul.f32 %v987, %v995
        %v1005 = vmul.f32 %v983, %v999
        %v1006 = vmul.f32 %v988, %v995
        %v1007 = vmul.f32 %v984, %v999
        %v1008 = vmul.f32 %v989, %v995
        %v1009 = vmul.f32 %v985, %v999
        %v1010 = vpack.c.bf16 %v1004, %v1002
        %v1011 = vpack.c.bf16 %v1005, %v1003
        %v1012 = vpack.c.bf16 %v1008, %v1006
        %v1013 = vpack.c.bf16 %v1009, %v1007
        %1014 = vst [vmem:[#allocation2 + $0x60] sm:$0xff] %v1010
        %1015 = vst [vmem:[#allocation2 + $0x68] sm:$0xff] %v1011
        %1016 = vst [vmem:[#allocation2 + $0x70] sm:$0xff] %v1012
        %1017 = vst [vmem:[#allocation2 + $0x78] sm:$0xff] %v1013
        %v1018 = vpack.c.bf16 %v796, %v792
        %v1019 = vpack.c.bf16 %v798, %v794
        %v1020 = vpack.c.bf16 %v806, %v802
        %v1021 = vpack.c.bf16 %v808, %v804
        %1022 = vst [vmem:[#allocation2 + $0x80] sm:$0xff] %v1018
        %1023 = vst [vmem:[#allocation2 + $0x88] sm:$0xff] %v1019
        %1024 = vst [vmem:[#allocation2 + $0x90] sm:$0xff] %v1020
        %1025 = vst [vmem:[#allocation2 + $0x98] sm:$0xff] %v1021
        %1026 = vrot.lane.b32.xlu0 %v792, 127
        %v1027 = vpop.permute.xlu0 %1026
        %1028 = vrot.lane.b32.xlu0 %v796, 127
        %v1029 = vpop.permute.xlu0 %1028
        %1030 = vrot.lane.b32.xlu0 %v802, 127
        %v1031 = vpop.permute.xlu0 %1030
        %1032 = vrot.lane.b32.xlu0 %v806, 127
        %v1033 = vpop.permute.xlu0 %1032
        %1034 = vrot.lane.b32.xlu0 %v794, 127
        %v1035 = vpop.permute.xlu0 %1034
        %1036 = vrot.lane.b32.xlu0 %v798, 127
        %v1037 = vpop.permute.xlu0 %1036
        %1038 = vrot.lane.b32.xlu0 %v804, 127
        %v1039 = vpop.permute.xlu0 %1038
        %1040 = vrot.lane.b32.xlu0 %v808, 127
        %v1041 = vpop.permute.xlu0 %1040
        %v1042 = vsel %vm582, %v1027, %v1035
        %v1043 = vsel %vm582, %v1029, %v1037
        %v1044 = vsel %vm582, %v1031, %v1039
        %v1045 = vsel %vm582, %v1033, %v1041
        %v1046 = vsel %vm582, %v1035, %v1027
        %v1047 = vsel %vm582, %v1037, %v1029
        %v1048 = vsel %vm582, %v1039, %v1031
        %v1049 = vsel %vm582, %v1041, %v1033
        %v1050 = vld [vmem:[%s587] ss:$8 sm:$0x3]
        %v1052 = vlaneseq
        %v1053 = vshrl.u32 %v1052, 7
        %v1054 = vsub.s32 0, %v1053
        %v1055 = vrot.slane %v1050, %v1054
        %v1056 = vlaneseq
        %v1057 = vshrl.u32 %v1056, 7
        %v1058 = vsub.s32 1, %v1057
        %v1059 = vrot.slane %v1050, %v1058
        %v1062 = vmul.f32 %v1042, %v1055
        %v1063 = vmul.f32 %v1046, %v1059
        %v1064 = vmul.f32 %v1043, %v1055
        %v1065 = vmul.f32 %v1047, %v1059
        %v1066 = vmul.f32 %v1044, %v1055
        %v1067 = vmul.f32 %v1048, %v1059
        %v1068 = vmul.f32 %v1045, %v1055
        %v1069 = vmul.f32 %v1049, %v1059
        %v1070 = vpack.c.bf16 %v1064, %v1062
        %v1071 = vpack.c.bf16 %v1065, %v1063
        %v1072 = vpack.c.bf16 %v1068, %v1066
        %v1073 = vpack.c.bf16 %v1069, %v1067
        %1074 = vst [vmem:[#allocation2 + $0xa0] sm:$0xff] %v1070
        %1075 = vst [vmem:[#allocation2 + $0xa8] sm:$0xff] %v1071
        %1076 = vst [vmem:[#allocation2 + $0xb0] sm:$0xff] %v1072
        %1077 = vst [vmem:[#allocation2 + $0xb8] sm:$0xff] %v1073
        %1078 = vrot.lane.b32.xlu0 %v792, 113
        %v1079 = vpop.permute.xlu0 %1078
        %1080 = vrot.lane.b32.xlu0 %v796, 113
        %v1081 = vpop.permute.xlu0 %1080
        %1082 = vrot.lane.b32.xlu0 %v802, 113
        %v1083 = vpop.permute.xlu0 %1082
        %1084 = vrot.lane.b32.xlu0 %v806, 113
        %v1085 = vpop.permute.xlu0 %1084
        %1086 = vrot.lane.b32.xlu0 %v794, 113
        %v1087 = vpop.permute.xlu0 %1086
        %1088 = vrot.lane.b32.xlu0 %v798, 113
        %v1089 = vpop.permute.xlu0 %1088
        %1090 = vrot.lane.b32.xlu0 %v804, 113
        %v1091 = vpop.permute.xlu0 %1090
        %1092 = vrot.lane.b32.xlu0 %v808, 113
        %v1093 = vpop.permute.xlu0 %1092
        %v1094 = vsel %vm616, %v1079, %v1087
        %v1095 = vsel %vm616, %v1081, %v1089
        %v1096 = vsel %vm616, %v1083, %v1091
        %v1097 = vsel %vm616, %v1085, %v1093
        %v1098 = vsel %vm616, %v1087, %v1079
        %v1099 = vsel %vm616, %v1089, %v1081
        %v1100 = vsel %vm616, %v1091, %v1083
        %v1101 = vsel %vm616, %v1093, %v1085
        %v1102 = vld [vmem:[%s621] ss:$8 sm:$0x3]
        %v1104 = vlaneseq
        %v1105 = vshrl.u32 %v1104, 7
        %v1106 = vsub.s32 0, %v1105
        %v1107 = vrot.slane %v1102, %v1106
        %v1108 = vlaneseq
        %v1109 = vshrl.u32 %v1108, 7
        %v1110 = vsub.s32 1, %v1109
        %v1111 = vrot.slane %v1102, %v1110
        %v1114 = vmul.f32 %v1094, %v1107
        %v1115 = vmul.f32 %v1098, %v1111
        %v1116 = vmul.f32 %v1095, %v1107
        %v1117 = vmul.f32 %v1099, %v1111
        %v1118 = vmul.f32 %v1096, %v1107
        %v1119 = vmul.f32 %v1100, %v1111
        %v1120 = vmul.f32 %v1097, %v1107
        %v1121 = vmul.f32 %v1101, %v1111
        %v1122 = vpack.c.bf16 %v1116, %v1114
        %v1123 = vpack.c.bf16 %v1117, %v1115
        %v1124 = vpack.c.bf16 %v1120, %v1118
        %v1125 = vpack.c.bf16 %v1121, %v1119
        %1126 = vst [vmem:[#allocation2 + $0xc0] sm:$0xff] %v1122
        %1127 = vst [vmem:[#allocation2 + $0xc8] sm:$0xff] %v1123
        %1128 = vst [vmem:[#allocation2 + $0xd0] sm:$0xff] %v1124
        %1129 = vst [vmem:[#allocation2 + $0xd8] sm:$0xff] %v1125
        %1130 = vrot.lane.b32.xlu0 %v792, 112
        %v1131 = vpop.permute.xlu0 %1130
        %1132 = vrot.lane.b32.xlu0 %v796, 112
        %v1133 = vpop.permute.xlu0 %1132
        %1134 = vrot.lane.b32.xlu0 %v802, 112
        %v1135 = vpop.permute.xlu0 %1134
        %1136 = vrot.lane.b32.xlu0 %v806, 112
        %v1137 = vpop.permute.xlu0 %1136
        %1138 = vrot.lane.b32.xlu0 %v794, 112
        %v1139 = vpop.permute.xlu0 %1138
        %1140 = vrot.lane.b32.xlu0 %v798, 112
        %v1141 = vpop.permute.xlu0 %1140
        %1142 = vrot.lane.b32.xlu0 %v804, 112
        %v1143 = vpop.permute.xlu0 %1142
        %1144 = vrot.lane.b32.xlu0 %v808, 112
        %v1145 = vpop.permute.xlu0 %1144
        %v1146 = vsel %vm650, %v1131, %v1139
        %v1147 = vsel %vm650, %v1133, %v1141
        %v1148 = vsel %vm650, %v1135, %v1143
        %v1149 = vsel %vm650, %v1137, %v1145
        %v1150 = vsel %vm650, %v1139, %v1131
        %v1151 = vsel %vm650, %v1141, %v1133
        %v1152 = vsel %vm650, %v1143, %v1135
        %v1153 = vsel %vm650, %v1145, %v1137
        %v1154 = vld [vmem:[%s655] ss:$8 sm:$0x3]
        %v1156 = vlaneseq
        %v1157 = vshrl.u32 %v1156, 7
        %v1158 = vsub.s32 0, %v1157
        %v1159 = vrot.slane %v1154, %v1158
        %v1160 = vlaneseq
        %v1161 = vshrl.u32 %v1160, 7
        %v1162 = vsub.s32 1, %v1161
        %v1163 = vrot.slane %v1154, %v1162
        %v1166 = vmul.f32 %v1146, %v1159
        %v1167 = vmul.f32 %v1150, %v1163
        %v1168 = vmul.f32 %v1147, %v1159
        %v1169 = vmul.f32 %v1151, %v1163
        %v1170 = vmul.f32 %v1148, %v1159
        %v1171 = vmul.f32 %v1152, %v1163
        %v1172 = vmul.f32 %v1149, %v1159
        %v1173 = vmul.f32 %v1153, %v1163
        %v1174 = vpack.c.bf16 %v1168, %v1166
        %v1175 = vpack.c.bf16 %v1169, %v1167
        %v1176 = vpack.c.bf16 %v1172, %v1170
        %v1177 = vpack.c.bf16 %v1173, %v1171
        %1178 = vst [vmem:[#allocation2 + $0xe0] sm:$0xff] %v1174
        %1179 = vst [vmem:[#allocation2 + $0xe8] sm:$0xff] %v1175
        %1180 = vst [vmem:[#allocation2 + $0xf0] sm:$0xff] %v1176
        %1181 = vst [vmem:[#allocation2 + $0xf8] sm:$0xff] %v1177
        %1182 = vrot.lane.b32.xlu0 %v792, 111
        %v1183 = vpop.permute.xlu0 %1182
        %1184 = vrot.lane.b32.xlu0 %v796, 111
        %v1185 = vpop.permute.xlu0 %1184
        %1186 = vrot.lane.b32.xlu0 %v802, 111
        %v1187 = vpop.permute.xlu0 %1186
        %1188 = vrot.lane.b32.xlu0 %v806, 111
        %v1189 = vpop.permute.xlu0 %1188
        %1190 = vrot.lane.b32.xlu0 %v794, 111
        %v1191 = vpop.permute.xlu0 %1190
        %1192 = vrot.lane.b32.xlu0 %v798, 111
        %v1193 = vpop.permute.xlu0 %1192
        %1194 = vrot.lane.b32.xlu0 %v804, 111
        %v1195 = vpop.permute.xlu0 %1194
        %1196 = vrot.lane.b32.xlu0 %v808, 111
        %v1197 = vpop.permute.xlu0 %1196
        %v1198 = vsel %vm684, %v1183, %v1191
        %v1199 = vsel %vm684, %v1185, %v1193
        %v1200 = vsel %vm684, %v1187, %v1195
        %v1201 = vsel %vm684, %v1189, %v1197
        %v1202 = vsel %vm684, %v1191, %v1183
        %v1203 = vsel %vm684, %v1193, %v1185
        %v1204 = vsel %vm684, %v1195, %v1187
        %v1205 = vsel %vm684, %v1197, %v1189
        %v1206 = vld [vmem:[%s689] ss:$8 sm:$0x3]
        %v1208 = vlaneseq
        %v1209 = vshrl.u32 %v1208, 7
        %v1210 = vsub.s32 0, %v1209
        %v1211 = vrot.slane %v1206, %v1210
        %v1212 = vlaneseq
        %v1213 = vshrl.u32 %v1212, 7
        %v1214 = vsub.s32 1, %v1213
        %v1215 = vrot.slane %v1206, %v1214
        %v1218 = vmul.f32 %v1198, %v1211
        %v1219 = vmul.f32 %v1202, %v1215
        %v1220 = vmul.f32 %v1199, %v1211
        %v1221 = vmul.f32 %v1203, %v1215
        %v1222 = vmul.f32 %v1200, %v1211
        %v1223 = vmul.f32 %v1204, %v1215
        %v1224 = vmul.f32 %v1201, %v1211
        %v1225 = vmul.f32 %v1205, %v1215
        %v1226 = vpack.c.bf16 %v1220, %v1218
        %v1227 = vpack.c.bf16 %v1221, %v1219
        %v1228 = vpack.c.bf16 %v1224, %v1222
        %v1229 = vpack.c.bf16 %v1225, %v1223
        %1230 = vst [vmem:[#allocation2 + $0x100] sm:$0xff] %v1226
        %1231 = vst [vmem:[#allocation2 + $0x108] sm:$0xff] %v1227
        %1232 = vst [vmem:[#allocation2 + $0x110] sm:$0xff] %v1228
        %1233 = vst [vmem:[#allocation2 + $0x118] sm:$0xff] %v1229
        %v1234 = vld [vmem:[%s3] sm:$0xff]
        %v1235 = vld [vmem:[%s3 + $0x8] sm:$0xf]
        %v1236 = vld [vmem:[%s3 + $0xc] sm:$0xff]
        %v1237 = vld [vmem:[%s3 + $0x14] sm:$0xf]
        %v1238 = vld [vmem:[%s3 + $0x18] sm:$0xff]
        %v1239 = vld [vmem:[%s3 + $0x20] sm:$0xf]
        %v1240 = vld [vmem:[%s3 + $0x24] sm:$0xff]
        %v1241 = vld [vmem:[%s3 + $0x2c] sm:$0xf]
        %v1242 = vld [vmem:[#allocation2] sm:$0xff]
        %v1243 = vld [vmem:[#allocation2 + $0x8] sm:$0xff]
        %v1244 = vld [vmem:[#allocation2 + $0x10] sm:$0xff]
        %v1245 = vld [vmem:[#allocation2 + $0x18] sm:$0xff]
        %v1246 = vld [vmem:[#allocation2 + $0x20] sm:$0xff]
        %v1247 = vld [vmem:[#allocation2 + $0x28] sm:$0xff]
        %v1248 = vld [vmem:[#allocation2 + $0x30] sm:$0xff]
        %v1249 = vld [vmem:[#allocation2 + $0x38] sm:$0xff]
        %v1250 = vld [vmem:[#allocation2 + $0x40] sm:$0xff]
        %v1251 = vld [vmem:[#allocation2 + $0x48] sm:$0xff]
        %v1252 = vld [vmem:[#allocation2 + $0x50] sm:$0xff]
        %v1253 = vld [vmem:[#allocation2 + $0x58] sm:$0xff]
        %v1254 = vld [vmem:[#allocation2 + $0x60] sm:$0xff]
        %v1255 = vld [vmem:[#allocation2 + $0x68] sm:$0xff]
        %v1256 = vld [vmem:[#allocation2 + $0x70] sm:$0xff]
        %v1257 = vld [vmem:[#allocation2 + $0x78] sm:$0xff]
        %v1258 = vld [vmem:[#allocation2 + $0x80] sm:$0xff]
        %v1259 = vld [vmem:[#allocation2 + $0x88] sm:$0xff]
        %v1260 = vld [vmem:[#allocation2 + $0x90] sm:$0xff]
        %v1261 = vld [vmem:[#allocation2 + $0x98] sm:$0xff]
        %v1262 = vld [vmem:[#allocation2 + $0xa0] sm:$0xff]
        %v1263 = vld [vmem:[#allocation2 + $0xa8] sm:$0xff]
        %v1264 = vld [vmem:[#allocation2 + $0xb0] sm:$0xff]
        %v1265 = vld [vmem:[#allocation2 + $0xb8] sm:$0xff]
        %v1266 = vld [vmem:[#allocation2 + $0xc0] sm:$0xff]
        %v1267 = vld [vmem:[#allocation2 + $0xc8] sm:$0xff]
        %v1268 = vld [vmem:[#allocation2 + $0xd0] sm:$0xff]
        %v1269 = vld [vmem:[#allocation2 + $0xd8] sm:$0xff]
        %v1270 = vld [vmem:[#allocation2 + $0xe0] sm:$0xff]
        %v1271 = vld [vmem:[#allocation2 + $0xe8] sm:$0xff]
        %v1272 = vld [vmem:[#allocation2 + $0xf0] sm:$0xff]
        %v1273 = vld [vmem:[#allocation2 + $0xf8] sm:$0xff]
        %v1274 = vld [vmem:[#allocation2 + $0x100] sm:$0xff]
        %v1275 = vld [vmem:[#allocation2 + $0x108] sm:$0xff]
        %v1276 = vld [vmem:[#allocation2 + $0x110] sm:$0xff]
        %v1277 = vld [vmem:[#allocation2 + $0x118] sm:$0xff]
        %v1286 = vunpack.c.l.b16 %v1234
        %v1287 = vunpack.c.h.b16 %v1234
        %v1288 = vunpack.c.l.b16 %v1235
        %v1289 = vunpack.c.l.b16 %v1236
        %v1290 = vunpack.c.h.b16 %v1236
        %v1291 = vunpack.c.l.b16 %v1237
        %v1292 = vunpack.c.l.b16 %v1238
        %v1293 = vunpack.c.h.b16 %v1238
        %v1294 = vunpack.c.l.b16 %v1239
        %v1295 = vunpack.c.l.b16 %v1240
        %v1296 = vunpack.c.h.b16 %v1240
        %v1297 = vunpack.c.l.b16 %v1241
        %v1298 = vpack.c.b16 %v1289, %v1286
        %v1299 = vpack.c.b16 %v1290, %v1287
        %v1300 = vpack.c.b16 %v1291, %v1288
        %v1301 = vpack.c.b16 %v1295, %v1292
        %v1302 = vpack.c.b16 %v1296, %v1293
        %v1303 = vpack.c.b16 %v1297, %v1294
        %vm1308 = vcmask 261120
        %v1310 = vsel %vm1308, %v1300, 0
        %v1313 = vsel %vm1308, %v1303, 0
        %1315 = vmatprep.subr.bf16.mxu0 %v1243
        %1316 = vmatpush1.bf16.msra.mxu0 %v1242
        %1317 = vmatprep.subr.bf16.mxu0 %v1245
        %1318 = vmatpush1.bf16.msra.mxu0 %v1244
        %1319 = vmatprep.subr.bf16.mxu0 %v1247
        %1320 = vmatpush1.bf16.msra.mxu0 %v1246
        %1321 = vmatprep.subr.bf16.mxu0 %v1249
        %1322 = vmatpush1.bf16.msra.mxu0 %v1248
        %1323 = vmatprep.subr.bf16.mxu0 %v1251
        %1324 = vmatpush1.bf16.msra.mxu0 %v1250
        %1325 = vmatprep.subr.bf16.mxu0 %v1253
        %1326 = vmatpush1.bf16.msra.mxu0 %v1252
        %1327 = vmatprep.subr.bf16.mxu0 %v1255
        %1328 = vmatpush1.bf16.msra.mxu0 %v1254
        %1329 = vmatprep.subr.bf16.mxu0 %v1257
        %1330 = vmatpush1.bf16.msra.mxu0 %v1256
        %1331 = vmatprep.subr.bf16.mxu0 %v1259
        %1332 = vmatpush1.bf16.msra.mxu0 %v1258
        %1333 = vmatprep.subr.bf16.mxu0 %v1261
        %1334 = vmatpush1.bf16.msra.mxu0 %v1260
        %1335 = vmatprep.subr.bf16.mxu0 %v1263
        %1336 = vmatpush1.bf16.msra.mxu0 %v1262
        %1337 = vmatprep.subr.bf16.mxu0 %v1265
        %1338 = vmatpush1.bf16.msra.mxu0 %v1264
        %1339 = vmatprep.subr.bf16.mxu0 %v1267
        %1340 = vmatpush1.bf16.msra.mxu0 %v1266
        %1341 = vmatprep.subr.bf16.mxu0 %v1269
        %1342 = vmatpush1.bf16.msra.mxu0 %v1268
        %1343 = vmatprep.subr.bf16.mxu0 %v1271
        %1344 = vmatpush1.bf16.msra.mxu0 %v1270
        %1345 = vmatprep.subr.bf16.mxu0 %v1273
        %1346 = vmatpush1.bf16.msra.mxu0 %v1272
        %1347 = vmatprep.mubr.bf16.mxu0 %v1299
        %1348 = vmatmul.mubr.bf16.gmra.mrb[0].mxu0 %v1298
        %v1349 = vpop.f32.mrb[0].mxu0
        %v1350 = vadd.f32 0.0, %v1349
        %v1351 = vpop.f32.mrb[0].mxu0
        %v1352 = vadd.f32 0.0, %v1351
        %v1353 = vpop.f32.mrb[0].mxu0
        %v1354 = vadd.f32 0.0, %v1353
        %v1355 = vpop.f32.mrb[0].mxu0
        %v1356 = vadd.f32 0.0, %v1355
        %1357 = vmatprep.mubr.bf16.mxu0 %v1302
        %1358 = vmatmul.mubr.bf16.gmra.mrb[0].mxu0 %v1301
        %v1359 = vpop.f32.mrb[0].mxu0
        %v1360 = vadd.f32 0.0, %v1359
        %v1361 = vpop.f32.mrb[0].mxu0
        %v1362 = vadd.f32 0.0, %v1361
        %v1363 = vpop.f32.mrb[0].mxu0
        %v1364 = vadd.f32 0.0, %v1363
        %v1365 = vpop.f32.mrb[0].mxu0
        %v1366 = vadd.f32 0.0, %v1365
        %1367 = vdwg.mxu0
        %1368 = vmatprep.subr.bf16.mxu0 %v1275
        %1369 = vmatpush1.bf16.msra.mxu0 %v1274
        %1370 = vmatprep.subr.bf16.mxu0 %v1277
        %1371 = vmatpush1.bf16.msra.mxu0 %v1276
        %1372 = vmatprep.subr.bf16.mxu0 0
        %1373 = vmatpush1.bf16.msra.mxu0 0
        %1374 = vmatprep.subr.bf16.mxu0 0
        %1375 = vmatpush1.bf16.msra.mxu0 0
        %1376 = vmatprep.subr.bf16.mxu0 0
        %1377 = vmatpush1.bf16.msra.mxu0 0
        %1378 = vmatprep.subr.bf16.mxu0 0
        %1379 = vmatpush1.bf16.msra.mxu0 0
        %1380 = vmatprep.subr.bf16.mxu0 0
        %1381 = vmatpush1.bf16.msra.mxu0 0
        %1382 = vmatprep.subr.bf16.mxu0 0
        %1383 = vmatpush1.bf16.msra.mxu0 0
        %1384 = vmatprep.subr.bf16.mxu0 0
        %1385 = vmatpush1.bf16.msra.mxu0 0
        %1386 = vmatprep.subr.bf16.mxu0 0
        %1387 = vmatpush1.bf16.msra.mxu0 0
        %1388 = vmatprep.subr.bf16.mxu0 0
        %1389 = vmatpush1.bf16.msra.mxu0 0
        %1390 = vmatprep.subr.bf16.mxu0 0
        %1391 = vmatpush1.bf16.msra.mxu0 0
        %1392 = vmatprep.subr.bf16.mxu0 0
        %1393 = vmatpush1.bf16.msra.mxu0 0
        %1394 = vmatprep.subr.bf16.mxu0 0
        %1395 = vmatpush1.bf16.msra.mxu0 0
        %1396 = vmatprep.subr.bf16.mxu0 0
        %1397 = vmatpush1.bf16.msra.mxu0 0
        %1398 = vmatprep.subr.bf16.mxu0 0
        %1399 = vmatpush1.bf16.msra.mxu0 0
        %1400 = vmatprep.mubr.bf16.mxu0 0
        %1401 = vmatmul.mubr.bf16.gmra.mrb[0].mxu0 %v1310
        %v1402 = vpop.f32.mrb[0].mxu0
        %v1403 = vadd.f32 %v1350, %v1402
        %v1404 = vpop.f32.mrb[0].mxu0
        %v1405 = vadd.f32 %v1352, %v1404
        %v1406 = vpop.f32.mrb[0].mxu0
        %v1407 = vadd.f32 %v1354, %v1406
        %v1408 = vpop.f32.mrb[0].mxu0
        %v1409 = vadd.f32 %v1356, %v1408
        %1410 = vmatprep.mubr.bf16.mxu0 0
        %1411 = vmatmul.mubr.bf16.gmra.mrb[0].mxu0 %v1313
        %v1412 = vpop.f32.mrb[0].mxu0
        %v1413 = vadd.f32 %v1360, %v1412
        %v1414 = vpop.f32.mrb[0].mxu0
        %v1415 = vadd.f32 %v1362, %v1414
        %v1416 = vpop.f32.mrb[0].mxu0
        %v1417 = vadd.f32 %v1364, %v1416
        %v1418 = vpop.f32.mrb[0].mxu0
        %v1419 = vadd.f32 %v1366, %v1418
        %1420 = vdwg.mxu0
        %v1421 = vld [vmem:[%s5] sm:$0xff]
        %v1422 = vld [vmem:[%s5 + $0x8] sm:$0xff]
        %v1423 = vld [vmem:[%s5 + $0x10] sm:$0xff]
        %v1424 = vld [vmem:[%s5 + $0x18] sm:$0xff]
        %1426 = vset.pattern.permute.xlu0 0
        %1427 = vperm.xlu0 %1426, %v1421
        %v1428 = vpop.permute.xlu0 %1427
        %1431 = vset.pattern.permute.xlu0 0
        %1432 = vperm.xlu0 %1431, %v1422
        %v1433 = vpop.permute.xlu0 %1432
        %1436 = vset.pattern.permute.xlu0 0
        %1437 = vperm.xlu0 %1436, %v1423
        %v1438 = vpop.permute.xlu0 %1437
        %1441 = vset.pattern.permute.xlu0 0
        %1442 = vperm.xlu0 %1441, %v1424
        %v1443 = vpop.permute.xlu0 %1442
        %v1445 = vmul.f32 %v1403, %v1428
        %v1446 = vmul.f32 %v1405, %v1428
        %v1447 = vmul.f32 %v1407, %v1433
        %v1448 = vmul.f32 %v1409, %v1433
        %v1449 = vmul.f32 %v1413, %v1438
        %v1450 = vmul.f32 %v1415, %v1438
        %v1451 = vmul.f32 %v1417, %v1443
        %v1452 = vmul.f32 %v1419, %v1443
        %v1453 = vld [vmem:[%s6] sm:$0xff]
        %v1454 = vld [vmem:[%s6 + $0x8] sm:$0xff]
        %v1455 = vld [vmem:[%s6 + $0x10] sm:$0xff]
        %v1456 = vld [vmem:[%s6 + $0x18] sm:$0xff]
        %1458 = vset.pattern.permute.xlu0 0
        %1459 = vperm.xlu0 %1458, %v1453
        %v1460 = vpop.permute.xlu0 %1459
        %1463 = vset.pattern.permute.xlu0 0
        %1464 = vperm.xlu0 %1463, %v1454
        %v1465 = vpop.permute.xlu0 %1464
        %1468 = vset.pattern.permute.xlu0 0
        %1469 = vperm.xlu0 %1468, %v1455
        %v1470 = vpop.permute.xlu0 %1469
        %1473 = vset.pattern.permute.xlu0 0
        %1474 = vperm.xlu0 %1473, %v1456
        %v1475 = vpop.permute.xlu0 %1474
        %v1477 = vadd.f32 %v1445, %v1460
        %v1478 = vadd.f32 %v1446, %v1460
        %v1479 = vadd.f32 %v1447, %v1465
        %v1480 = vadd.f32 %v1448, %v1465
        %v1481 = vadd.f32 %v1449, %v1470
        %v1482 = vadd.f32 %v1450, %v1470
        %v1483 = vadd.f32 %v1451, %v1475
        %v1484 = vadd.f32 %v1452, %v1475
        %v1485 = vmax.f32 %v1477, 0.0
        %v1486 = vmax.f32 %v1478, 0.0
        %v1487 = vmax.f32 %v1479, 0.0
        %v1488 = vmax.f32 %v1480, 0.0
        %v1489 = vmax.f32 %v1481, 0.0
        %v1490 = vmax.f32 %v1482, 0.0
        %v1491 = vmax.f32 %v1483, 0.0
        %v1492 = vmax.f32 %v1484, 0.0
        %1493 = vrot.lane.b32.xlu0 %v1485, 17
        %v1494 = vpop.permute.xlu0 %1493
        %1495 = vrot.lane.b32.xlu0 %v1487, 17
        %v1496 = vpop.permute.xlu0 %1495
        %1497 = vrot.lane.b32.xlu0 %v1489, 17
        %v1498 = vpop.permute.xlu0 %1497
        %1499 = vrot.lane.b32.xlu0 %v1491, 17
        %v1500 = vpop.permute.xlu0 %1499
        %1501 = vrot.lane.b32.xlu0 %v1486, 17
        %v1502 = vpop.permute.xlu0 %1501
        %1503 = vrot.lane.b32.xlu0 %v1488, 17
        %v1504 = vpop.permute.xlu0 %1503
        %1505 = vrot.lane.b32.xlu0 %v1490, 17
        %v1506 = vpop.permute.xlu0 %1505
        %1507 = vrot.lane.b32.xlu0 %v1492, 17
        %v1508 = vpop.permute.xlu0 %1507
        %v1509 = vsel %vm443, %v1494, %v1502
        %v1510 = vsel %vm443, %v1496, %v1504
        %v1511 = vsel %vm443, %v1498, %v1506
        %v1512 = vsel %vm443, %v1500, %v1508
        %v1513 = vsel %vm443, %v1502, %v1494
        %v1514 = vsel %vm443, %v1504, %v1496
        %v1515 = vsel %vm443, %v1506, %v1498
        %v1516 = vsel %vm443, %v1508, %v1500
        %v1517 = vld [vmem:[%s1] ss:$8 sm:$0x3]
        %v1519 = vlaneseq
        %v1520 = vshrl.u32 %v1519, 7
        %v1521 = vsub.s32 0, %v1520
        %v1522 = vrot.slane %v1517, %v1521
        %v1523 = vlaneseq
        %v1524 = vshrl.u32 %v1523, 7
        %v1525 = vsub.s32 1, %v1524
        %v1526 = vrot.slane %v1517, %v1525
        %v1529 = vmul.f32 %v1513, %v1522
        %v1530 = vmul.f32 %v1509, %v1526
        %v1531 = vmul.f32 %v1514, %v1522
        %v1532 = vmul.f32 %v1510, %v1526
        %v1533 = vmul.f32 %v1515, %v1522
        %v1534 = vmul.f32 %v1511, %v1526
        %v1535 = vmul.f32 %v1516, %v1522
        %v1536 = vmul.f32 %v1512, %v1526
        %v1537 = vpack.c.bf16 %v1531, %v1529
        %v1538 = vpack.c.bf16 %v1532, %v1530
        %v1539 = vpack.c.bf16 %v1535, %v1533
        %v1540 = vpack.c.bf16 %v1536, %v1534
        %1541 = vst [vmem:[#allocation2] sm:$0xff] %v1537
        %1542 = vst [vmem:[#allocation2 + $0x8] sm:$0xff] %v1538
        %1543 = vst [vmem:[#allocation2 + $0x10] sm:$0xff] %v1539
        %1544 = vst [vmem:[#allocation2 + $0x18] sm:$0xff] %v1540
        %1545 = vrot.lane.b32.xlu0 %v1485, 16
        %v1546 = vpop.permute.xlu0 %1545
        %1547 = vrot.lane.b32.xlu0 %v1487, 16
        %v1548 = vpop.permute.xlu0 %1547
        %1549 = vrot.lane.b32.xlu0 %v1489, 16
        %v1550 = vpop.permute.xlu0 %1549
        %1551 = vrot.lane.b32.xlu0 %v1491, 16
        %v1552 = vpop.permute.xlu0 %1551
        %1553 = vrot.lane.b32.xlu0 %v1486, 16
        %v1554 = vpop.permute.xlu0 %1553
        %1555 = vrot.lane.b32.xlu0 %v1488, 16
        %v1556 = vpop.permute.xlu0 %1555
        %1557 = vrot.lane.b32.xlu0 %v1490, 16
        %v1558 = vpop.permute.xlu0 %1557
        %1559 = vrot.lane.b32.xlu0 %v1492, 16
        %v1560 = vpop.permute.xlu0 %1559
        %v1561 = vsel %vm476, %v1546, %v1554
        %v1562 = vsel %vm476, %v1548, %v1556
        %v1563 = vsel %vm476, %v1550, %v1558
        %v1564 = vsel %vm476, %v1552, %v1560
        %v1565 = vsel %vm476, %v1554, %v1546
        %v1566 = vsel %vm476, %v1556, %v1548
        %v1567 = vsel %vm476, %v1558, %v1550
        %v1568 = vsel %vm476, %v1560, %v1552
        %v1569 = vld [vmem:[%s481] ss:$8 sm:$0x3]
        %v1571 = vlaneseq
        %v1572 = vshrl.u32 %v1571, 7
        %v1573 = vsub.s32 0, %v1572
        %v1574 = vrot.slane %v1569, %v1573
        %v1575 = vlaneseq
        %v1576 = vshrl.u32 %v1575, 7
        %v1577 = vsub.s32 1, %v1576
        %v1578 = vrot.slane %v1569, %v1577
        %v1581 = vmul.f32 %v1565, %v1574
        %v1582 = vmul.f32 %v1561, %v1578
        %v1583 = vmul.f32 %v1566, %v1574
        %v1584 = vmul.f32 %v1562, %v1578
        %v1585 = vmul.f32 %v1567, %v1574
        %v1586 = vmul.f32 %v1563, %v1578
        %v1587 = vmul.f32 %v1568, %v1574
        %v1588 = vmul.f32 %v1564, %v1578
        %v1589 = vpack.c.bf16 %v1583, %v1581
        %v1590 = vpack.c.bf16 %v1584, %v1582
        %v1591 = vpack.c.bf16 %v1587, %v1585
        %v1592 = vpack.c.bf16 %v1588, %v1586
        %1593 = vst [vmem:[#allocation2 + $0x20] sm:$0xff] %v1589
        %1594 = vst [vmem:[#allocation2 + $0x28] sm:$0xff] %v1590
        %1595 = vst [vmem:[#allocation2 + $0x30] sm:$0xff] %v1591
        %1596 = vst [vmem:[#allocation2 + $0x38] sm:$0xff] %v1592
        %1597 = vrot.lane.b32.xlu0 %v1485, 15
        %v1598 = vpop.permute.xlu0 %1597
        %1599 = vrot.lane.b32.xlu0 %v1487, 15
        %v1600 = vpop.permute.xlu0 %1599
        %1601 = vrot.lane.b32.xlu0 %v1489, 15
        %v1602 = vpop.permute.xlu0 %1601
        %1603 = vrot.lane.b32.xlu0 %v1491, 15
        %v1604 = vpop.permute.xlu0 %1603
        %1605 = vrot.lane.b32.xlu0 %v1486, 15
        %v1606 = vpop.permute.xlu0 %1605
        %1607 = vrot.lane.b32.xlu0 %v1488, 15
        %v1608 = vpop.permute.xlu0 %1607
        %1609 = vrot.lane.b32.xlu0 %v1490, 15
        %v1610 = vpop.permute.xlu0 %1609
        %1611 = vrot.lane.b32.xlu0 %v1492, 15
        %v1612 = vpop.permute.xlu0 %1611
        %v1613 = vsel %vm510, %v1598, %v1606
        %v1614 = vsel %vm510, %v1600, %v1608
        %v1615 = vsel %vm510, %v1602, %v1610
        %v1616 = vsel %vm510, %v1604, %v1612
        %v1617 = vsel %vm510, %v1606, %v1598
        %v1618 = vsel %vm510, %v1608, %v1600
        %v1619 = vsel %vm510, %v1610, %v1602
        %v1620 = vsel %vm510, %v1612, %v1604
        %v1621 = vld [vmem:[%s515] ss:$8 sm:$0x3]
        %v1623 = vlaneseq
        %v1624 = vshrl.u32 %v1623, 7
        %v1625 = vsub.s32 0, %v1624
        %v1626 = vrot.slane %v1621, %v1625
        %v1627 = vlaneseq
        %v1628 = vshrl.u32 %v1627, 7
        %v1629 = vsub.s32 1, %v1628
        %v1630 = vrot.slane %v1621, %v1629
        %v1633 = vmul.f32 %v1617, %v1626
        %v1634 = vmul.f32 %v1613, %v1630
        %v1635 = vmul.f32 %v1618, %v1626
        %v1636 = vmul.f32 %v1614, %v1630
        %v1637 = vmul.f32 %v1619, %v1626
        %v1638 = vmul.f32 %v1615, %v1630
        %v1639 = vmul.f32 %v1620, %v1626
        %v1640 = vmul.f32 %v1616, %v1630
        %v1641 = vpack.c.bf16 %v1635, %v1633
        %v1642 = vpack.c.bf16 %v1636, %v1634
        %v1643 = vpack.c.bf16 %v1639, %v1637
        %v1644 = vpack.c.bf16 %v1640, %v1638
        %1645 = vst [vmem:[#allocation2 + $0x40] sm:$0xff] %v1641
        %1646 = vst [vmem:[#allocation2 + $0x48] sm:$0xff] %v1642
        %1647 = vst [vmem:[#allocation2 + $0x50] sm:$0xff] %v1643
        %1648 = vst [vmem:[#allocation2 + $0x58] sm:$0xff] %v1644
        %1649 = vrot.lane.b32.xlu0 %v1485, 1
        %v1650 = vpop.permute.xlu0 %1649
        %1651 = vrot.lane.b32.xlu0 %v1487, 1
        %v1652 = vpop.permute.xlu0 %1651
        %1653 = vrot.lane.b32.xlu0 %v1489, 1
        %v1654 = vpop.permute.xlu0 %1653
        %1655 = vrot.lane.b32.xlu0 %v1491, 1
        %v1656 = vpop.permute.xlu0 %1655
        %1657 = vrot.lane.b32.xlu0 %v1486, 1
        %v1658 = vpop.permute.xlu0 %1657
        %1659 = vrot.lane.b32.xlu0 %v1488, 1
        %v1660 = vpop.permute.xlu0 %1659
        %1661 = vrot.lane.b32.xlu0 %v1490, 1
        %v1662 = vpop.permute.xlu0 %1661
        %1663 = vrot.lane.b32.xlu0 %v1492, 1
        %v1664 = vpop.permute.xlu0 %1663
        %v1665 = vsel %vm544, %v1650, %v1658
        %v1666 = vsel %vm544, %v1652, %v1660
        %v1667 = vsel %vm544, %v1654, %v1662
        %v1668 = vsel %vm544, %v1656, %v1664
        %v1669 = vsel %vm544, %v1658, %v1650
        %v1670 = vsel %vm544, %v1660, %v1652
        %v1671 = vsel %vm544, %v1662, %v1654
        %v1672 = vsel %vm544, %v1664, %v1656
        %v1673 = vld [vmem:[%s549] ss:$8 sm:$0x3]
        %v1675 = vlaneseq
        %v1676 = vshrl.u32 %v1675, 7
        %v1677 = vsub.s32 0, %v1676
        %v1678 = vrot.slane %v1673, %v1677
        %v1679 = vlaneseq
        %v1680 = vshrl.u32 %v1679, 7
        %v1681 = vsub.s32 1, %v1680
        %v1682 = vrot.slane %v1673, %v1681
        %v1685 = vmul.f32 %v1669, %v1678
        %v1686 = vmul.f32 %v1665, %v1682
        %v1687 = vmul.f32 %v1670, %v1678
        %v1688 = vmul.f32 %v1666, %v1682
        %v1689 = vmul.f32 %v1671, %v1678
        %v1690 = vmul.f32 %v1667, %v1682
        %v1691 = vmul.f32 %v1672, %v1678
        %v1692 = vmul.f32 %v1668, %v1682
        %v1693 = vpack.c.bf16 %v1687, %v1685
        %v1694 = vpack.c.bf16 %v1688, %v1686
        %v1695 = vpack.c.bf16 %v1691, %v1689
        %v1696 = vpack.c.bf16 %v1692, %v1690
        %1697 = vst [vmem:[#allocation2 + $0x60] sm:$0xff] %v1693
        %1698 = vst [vmem:[#allocation2 + $0x68] sm:$0xff] %v1694
        %1699 = vst [vmem:[#allocation2 + $0x70] sm:$0xff] %v1695
        %1700 = vst [vmem:[#allocation2 + $0x78] sm:$0xff] %v1696
        %v1701 = vpack.c.bf16 %v1487, %v1485
        %v1702 = vpack.c.bf16 %v1488, %v1486
        %v1703 = vpack.c.bf16 %v1491, %v1489
        %v1704 = vpack.c.bf16 %v1492, %v1490
        %1705 = vst [vmem:[#allocation2 + $0x80] sm:$0xff] %v1701
        %1706 = vst [vmem:[#allocation2 + $0x88] sm:$0xff] %v1702
        %1707 = vst [vmem:[#allocation2 + $0x90] sm:$0xff] %v1703
        %1708 = vst [vmem:[#allocation2 + $0x98] sm:$0xff] %v1704
        %1709 = vrot.lane.b32.xlu0 %v1485, 127
        %v1710 = vpop.permute.xlu0 %1709
        %1711 = vrot.lane.b32.xlu0 %v1487, 127
        %v1712 = vpop.permute.xlu0 %1711
        %1713 = vrot.lane.b32.xlu0 %v1489, 127
        %v1714 = vpop.permute.xlu0 %1713
        %1715 = vrot.lane.b32.xlu0 %v1491, 127
        %v1716 = vpop.permute.xlu0 %1715
        %1717 = vrot.lane.b32.xlu0 %v1486, 127
        %v1718 = vpop.permute.xlu0 %1717
        %1719 = vrot.lane.b32.xlu0 %v1488, 127
        %v1720 = vpop.permute.xlu0 %1719
        %1721 = vrot.lane.b32.xlu0 %v1490, 127
        %v1722 = vpop.permute.xlu0 %1721
        %1723 = vrot.lane.b32.xlu0 %v1492, 127
        %v1724 = vpop.permute.xlu0 %1723
        %v1725 = vsel %vm582, %v1710, %v1718
        %v1726 = vsel %vm582, %v1712, %v1720
        %v1727 = vsel %vm582, %v1714, %v1722
        %v1728 = vsel %vm582, %v1716, %v1724
        %v1729 = vsel %vm582, %v1718, %v1710
        %v1730 = vsel %vm582, %v1720, %v1712
        %v1731 = vsel %vm582, %v1722, %v1714
        %v1732 = vsel %vm582, %v1724, %v1716
        %v1733 = vld [vmem:[%s587] ss:$8 sm:$0x3]
        %v1735 = vlaneseq
        %v1736 = vshrl.u32 %v1735, 7
        %v1737 = vsub.s32 0, %v1736
        %v1738 = vrot.slane %v1733, %v1737
        %v1739 = vlaneseq
        %v1740 = vshrl.u32 %v1739, 7
        %v1741 = vsub.s32 1, %v1740
        %v1742 = vrot.slane %v1733, %v1741
        %v1745 = vmul.f32 %v1725, %v1738
        %v1746 = vmul.f32 %v1729, %v1742
        %v1747 = vmul.f32 %v1726, %v1738
        %v1748 = vmul.f32 %v1730, %v1742
        %v1749 = vmul.f32 %v1727, %v1738
        %v1750 = vmul.f32 %v1731, %v1742
        %v1751 = vmul.f32 %v1728, %v1738
        %v1752 = vmul.f32 %v1732, %v1742
        %v1753 = vpack.c.bf16 %v1747, %v1745
        %v1754 = vpack.c.bf16 %v1748, %v1746
        %v1755 = vpack.c.bf16 %v1751, %v1749
        %v1756 = vpack.c.bf16 %v1752, %v1750
        %1757 = vst [vmem:[#allocation2 + $0xa0] sm:$0xff] %v1753
        %1758 = vst [vmem:[#allocation2 + $0xa8] sm:$0xff] %v1754
        %1759 = vst [vmem:[#allocation2 + $0xb0] sm:$0xff] %v1755
        %1760 = vst [vmem:[#allocation2 + $0xb8] sm:$0xff] %v1756
        %1761 = vrot.lane.b32.xlu0 %v1485, 113
        %v1762 = vpop.permute.xlu0 %1761
        %1763 = vrot.lane.b32.xlu0 %v1487, 113
        %v1764 = vpop.permute.xlu0 %1763
        %1765 = vrot.lane.b32.xlu0 %v1489, 113
        %v1766 = vpop.permute.xlu0 %1765
        %1767 = vrot.lane.b32.xlu0 %v1491, 113
        %v1768 = vpop.permute.xlu0 %1767
        %1769 = vrot.lane.b32.xlu0 %v1486, 113
        %v1770 = vpop.permute.xlu0 %1769
        %1771 = vrot.lane.b32.xlu0 %v1488, 113
        %v1772 = vpop.permute.xlu0 %1771
        %1773 = vrot.lane.b32.xlu0 %v1490, 113
        %v1774 = vpop.permute.xlu0 %1773
        %1775 = vrot.lane.b32.xlu0 %v1492, 113
        %v1776 = vpop.permute.xlu0 %1775
        %v1777 = vsel %vm616, %v1762, %v1770
        %v1778 = vsel %vm616, %v1764, %v1772
        %v1779 = vsel %vm616, %v1766, %v1774
        %v1780 = vsel %vm616, %v1768, %v1776
        %v1781 = vsel %vm616, %v1770, %v1762
        %v1782 = vsel %vm616, %v1772, %v1764
        %v1783 = vsel %vm616, %v1774, %v1766
        %v1784 = vsel %vm616, %v1776, %v1768
        %v1785 = vld [vmem:[%s621] ss:$8 sm:$0x3]
        %v1787 = vlaneseq
        %v1788 = vshrl.u32 %v1787, 7
        %v1789 = vsub.s32 0, %v1788
        %v1790 = vrot.slane %v1785, %v1789
        %v1791 = vlaneseq
        %v1792 = vshrl.u32 %v1791, 7
        %v1793 = vsub.s32 1, %v1792
        %v1794 = vrot.slane %v1785, %v1793
        %v1797 = vmul.f32 %v1777, %v1790
        %v1798 = vmul.f32 %v1781, %v1794
        %v1799 = vmul.f32 %v1778, %v1790
        %v1800 = vmul.f32 %v1782, %v1794
        %v1801 = vmul.f32 %v1779, %v1790
        %v1802 = vmul.f32 %v1783, %v1794
        %v1803 = vmul.f32 %v1780, %v1790
        %v1804 = vmul.f32 %v1784, %v1794
        %v1805 = vpack.c.bf16 %v1799, %v1797
        %v1806 = vpack.c.bf16 %v1800, %v1798
        %v1807 = vpack.c.bf16 %v1803, %v1801
        %v1808 = vpack.c.bf16 %v1804, %v1802
        %1809 = vst [vmem:[#allocation2 + $0xc0] sm:$0xff] %v1805
        %1810 = vst [vmem:[#allocation2 + $0xc8] sm:$0xff] %v1806
        %1811 = vst [vmem:[#allocation2 + $0xd0] sm:$0xff] %v1807
        %1812 = vst [vmem:[#allocation2 + $0xd8] sm:$0xff] %v1808
        %1813 = vrot.lane.b32.xlu0 %v1485, 112
        %v1814 = vpop.permute.xlu0 %1813
        %1815 = vrot.lane.b32.xlu0 %v1487, 112
        %v1816 = vpop.permute.xlu0 %1815
        %1817 = vrot.lane.b32.xlu0 %v1489, 112
        %v1818 = vpop.permute.xlu0 %1817
        %1819 = vrot.lane.b32.xlu0 %v1491, 112
        %v1820 = vpop.permute.xlu0 %1819
        %1821 = vrot.lane.b32.xlu0 %v1486, 112
        %v1822 = vpop.permute.xlu0 %1821
        %1823 = vrot.lane.b32.xlu0 %v1488, 112
        %v1824 = vpop.permute.xlu0 %1823
        %1825 = vrot.lane.b32.xlu0 %v1490, 112
        %v1826 = vpop.permute.xlu0 %1825
        %1827 = vrot.lane.b32.xlu0 %v1492, 112
        %v1828 = vpop.permute.xlu0 %1827
        %v1829 = vsel %vm650, %v1814, %v1822
        %v1830 = vsel %vm650, %v1816, %v1824
        %v1831 = vsel %vm650, %v1818, %v1826
        %v1832 = vsel %vm650, %v1820, %v1828
        %v1833 = vsel %vm650, %v1822, %v1814
        %v1834 = vsel %vm650, %v1824, %v1816
        %v1835 = vsel %vm650, %v1826, %v1818
        %v1836 = vsel %vm650, %v1828, %v1820
        %v1837 = vld [vmem:[%s655] ss:$8 sm:$0x3]
        %v1839 = vlaneseq
        %v1840 = vshrl.u32 %v1839, 7
        %v1841 = vsub.s32 0, %v1840
        %v1842 = vrot.slane %v1837, %v1841
        %v1843 = vlaneseq
        %v1844 = vshrl.u32 %v1843, 7
        %v1845 = vsub.s32 1, %v1844
        %v1846 = vrot.slane %v1837, %v1845
        %v1849 = vmul.f32 %v1829, %v1842
        %v1850 = vmul.f32 %v1833, %v1846
        %v1851 = vmul.f32 %v1830, %v1842
        %v1852 = vmul.f32 %v1834, %v1846
        %v1853 = vmul.f32 %v1831, %v1842
        %v1854 = vmul.f32 %v1835, %v1846
        %v1855 = vmul.f32 %v1832, %v1842
        %v1856 = vmul.f32 %v1836, %v1846
        %v1857 = vpack.c.bf16 %v1851, %v1849
        %v1858 = vpack.c.bf16 %v1852, %v1850
        %v1859 = vpack.c.bf16 %v1855, %v1853
        %v1860 = vpack.c.bf16 %v1856, %v1854
        %1861 = vst [vmem:[#allocation2 + $0xe0] sm:$0xff] %v1857
        %1862 = vst [vmem:[#allocation2 + $0xe8] sm:$0xff] %v1858
        %1863 = vst [vmem:[#allocation2 + $0xf0] sm:$0xff] %v1859
        %1864 = vst [vmem:[#allocation2 + $0xf8] sm:$0xff] %v1860
        %1865 = vrot.lane.b32.xlu0 %v1485, 111
        %v1866 = vpop.permute.xlu0 %1865
        %1867 = vrot.lane.b32.xlu0 %v1487, 111
        %v1868 = vpop.permute.xlu0 %1867
        %1869 = vrot.lane.b32.xlu0 %v1489, 111
        %v1870 = vpop.permute.xlu0 %1869
        %1871 = vrot.lane.b32.xlu0 %v1491, 111
        %v1872 = vpop.permute.xlu0 %1871
        %1873 = vrot.lane.b32.xlu0 %v1486, 111
        %v1874 = vpop.permute.xlu0 %1873
        %1875 = vrot.lane.b32.xlu0 %v1488, 111
        %v1876 = vpop.permute.xlu0 %1875
        %1877 = vrot.lane.b32.xlu0 %v1490, 111
        %v1878 = vpop.permute.xlu0 %1877
        %1879 = vrot.lane.b32.xlu0 %v1492, 111
        %v1880 = vpop.permute.xlu0 %1879
        %v1881 = vsel %vm684, %v1866, %v1874
        %v1882 = vsel %vm684, %v1868, %v1876
        %v1883 = vsel %vm684, %v1870, %v1878
        %v1884 = vsel %vm684, %v1872, %v1880
        %v1885 = vsel %vm684, %v1874, %v1866
        %v1886 = vsel %vm684, %v1876, %v1868
        %v1887 = vsel %vm684, %v1878, %v1870
        %v1888 = vsel %vm684, %v1880, %v1872
        %v1889 = vld [vmem:[%s689] ss:$8 sm:$0x3]
        %v1891 = vlaneseq
        %v1892 = vshrl.u32 %v1891, 7
        %v1893 = vsub.s32 0, %v1892
        %v1894 = vrot.slane %v1889, %v1893
        %v1895 = vlaneseq
        %v1896 = vshrl.u32 %v1895, 7
        %v1897 = vsub.s32 1, %v1896
        %v1898 = vrot.slane %v1889, %v1897
        %v1901 = vmul.f32 %v1881, %v1894
        %v1902 = vmul.f32 %v1885, %v1898
        %v1903 = vmul.f32 %v1882, %v1894
        %v1904 = vmul.f32 %v1886, %v1898
        %v1905 = vmul.f32 %v1883, %v1894
        %v1906 = vmul.f32 %v1887, %v1898
        %v1907 = vmul.f32 %v1884, %v1894
        %v1908 = vmul.f32 %v1888, %v1898
        %v1909 = vpack.c.bf16 %v1903, %v1901
        %v1910 = vpack.c.bf16 %v1904, %v1902
        %v1911 = vpack.c.bf16 %v1907, %v1905
        %v1912 = vpack.c.bf16 %v1908, %v1906
        %1913 = vst [vmem:[#allocation2 + $0x100] sm:$0xff] %v1909
        %1914 = vst [vmem:[#allocation2 + $0x108] sm:$0xff] %v1910
        %1915 = vst [vmem:[#allocation2 + $0x110] sm:$0xff] %v1911
        %1916 = vst [vmem:[#allocation2 + $0x118] sm:$0xff] %v1912
        %v1917 = vld [vmem:[%s4] sm:$0xff]
        %v1918 = vld [vmem:[%s4 + $0x8] sm:$0xf]
        %v1919 = vld [vmem:[%s4 + $0xc] sm:$0xff]
        %v1920 = vld [vmem:[%s4 + $0x14] sm:$0xf]
        %v1921 = vld [vmem:[%s4 + $0x18] sm:$0xff]
        %v1922 = vld [vmem:[%s4 + $0x20] sm:$0xf]
        %v1923 = vld [vmem:[%s4 + $0x24] sm:$0xff]
        %v1924 = vld [vmem:[%s4 + $0x2c] sm:$0xf]
        %v1925 = vld [vmem:[#allocation2] sm:$0xff]
        %v1926 = vld [vmem:[#allocation2 + $0x8] sm:$0xff]
        %v1927 = vld [vmem:[#allocation2 + $0x10] sm:$0xff]
        %v1928 = vld [vmem:[#allocation2 + $0x18] sm:$0xff]
        %v1929 = vld [vmem:[#allocation2 + $0x20] sm:$0xff]
        %v1930 = vld [vmem:[#allocation2 + $0x28] sm:$0xff]
        %v1931 = vld [vmem:[#allocation2 + $0x30] sm:$0xff]
        %v1932 = vld [vmem:[#allocation2 + $0x38] sm:$0xff]
        %v1933 = vld [vmem:[#allocation2 + $0x40] sm:$0xff]
        %v1934 = vld [vmem:[#allocation2 + $0x48] sm:$0xff]
        %v1935 = vld [vmem:[#allocation2 + $0x50] sm:$0xff]
        %v1936 = vld [vmem:[#allocation2 + $0x58] sm:$0xff]
        %v1937 = vld [vmem:[#allocation2 + $0x60] sm:$0xff]
        %v1938 = vld [vmem:[#allocation2 + $0x68] sm:$0xff]
        %v1939 = vld [vmem:[#allocation2 + $0x70] sm:$0xff]
        %v1940 = vld [vmem:[#allocation2 + $0x78] sm:$0xff]
        %v1941 = vld [vmem:[#allocation2 + $0x80] sm:$0xff]
        %v1942 = vld [vmem:[#allocation2 + $0x88] sm:$0xff]
        %v1943 = vld [vmem:[#allocation2 + $0x90] sm:$0xff]
        %v1944 = vld [vmem:[#allocation2 + $0x98] sm:$0xff]
        %v1945 = vld [vmem:[#allocation2 + $0xa0] sm:$0xff]
        %v1946 = vld [vmem:[#allocation2 + $0xa8] sm:$0xff]
        %v1947 = vld [vmem:[#allocation2 + $0xb0] sm:$0xff]
        %v1948 = vld [vmem:[#allocation2 + $0xb8] sm:$0xff]
        %v1949 = vld [vmem:[#allocation2 + $0xc0] sm:$0xff]
        %v1950 = vld [vmem:[#allocation2 + $0xc8] sm:$0xff]
        %v1951 = vld [vmem:[#allocation2 + $0xd0] sm:$0xff]
        %v1952 = vld [vmem:[#allocation2 + $0xd8] sm:$0xff]
        %v1953 = vld [vmem:[#allocation2 + $0xe0] sm:$0xff]
        %v1954 = vld [vmem:[#allocation2 + $0xe8] sm:$0xff]
        %v1955 = vld [vmem:[#allocation2 + $0xf0] sm:$0xff]
        %v1956 = vld [vmem:[#allocation2 + $0xf8] sm:$0xff]
        %v1957 = vld [vmem:[#allocation2 + $0x100] sm:$0xff]
        %v1958 = vld [vmem:[#allocation2 + $0x108] sm:$0xff]
        %v1959 = vld [vmem:[#allocation2 + $0x110] sm:$0xff]
        %v1960 = vld [vmem:[#allocation2 + $0x118] sm:$0xff]
        %v1969 = vunpack.c.l.b16 %v1917
        %v1970 = vunpack.c.h.b16 %v1917
        %v1971 = vunpack.c.l.b16 %v1918
        %v1972 = vunpack.c.l.b16 %v1919
        %v1973 = vunpack.c.h.b16 %v1919
        %v1974 = vunpack.c.l.b16 %v1920
        %v1975 = vunpack.c.l.b16 %v1921
        %v1976 = vunpack.c.h.b16 %v1921
        %v1977 = vunpack.c.l.b16 %v1922
        %v1978 = vunpack.c.l.b16 %v1923
        %v1979 = vunpack.c.h.b16 %v1923
        %v1980 = vunpack.c.l.b16 %v1924
        %v1981 = vpack.c.b16 %v1972, %v1969
        %v1982 = vpack.c.b16 %v1973, %v1970
        %v1983 = vpack.c.b16 %v1974, %v1971
        %v1984 = vpack.c.b16 %v1978, %v1975
        %v1985 = vpack.c.b16 %v1979, %v1976
        %v1986 = vpack.c.b16 %v1980, %v1977
        %v1992 = vsel %vm1308, %v1983, 0
        %v1995 = vsel %vm1308, %v1986, 0
        %1997 = vmatprep.subr.bf16.mxu0 %v1926
        %1998 = vmatpush1.bf16.msra.mxu0 %v1925
        %1999 = vmatprep.subr.bf16.mxu0 %v1928
        %2000 = vmatpush1.bf16.msra.mxu0 %v1927
        %2001 = vmatprep.subr.bf16.mxu0 %v1930
        %2002 = vmatpush1.bf16.msra.mxu0 %v1929
        %2003 = vmatprep.subr.bf16.mxu0 %v1932
        %2004 = vmatpush1.bf16.msra.mxu0 %v1931
        %2005 = vmatprep.subr.bf16.mxu0 %v1934
        %2006 = vmatpush1.bf16.msra.mxu0 %v1933
        %2007 = vmatprep.subr.bf16.mxu0 %v1936
        %2008 = vmatpush1.bf16.msra.mxu0 %v1935
        %2009 = vmatprep.subr.bf16.mxu0 %v1938
        %2010 = vmatpush1.bf16.msra.mxu0 %v1937
        %2011 = vmatprep.subr.bf16.mxu0 %v1940
        %2012 = vmatpush1.bf16.msra.mxu0 %v1939
        %2013 = vmatprep.subr.bf16.mxu0 %v1942
        %2014 = vmatpush1.bf16.msra.mxu0 %v1941
        %2015 = vmatprep.subr.bf16.mxu0 %v1944
        %2016 = vmatpush1.bf16.msra.mxu0 %v1943
        %2017 = vmatprep.subr.bf16.mxu0 %v1946
        %2018 = vmatpush1.bf16.msra.mxu0 %v1945
        %2019 = vmatprep.subr.bf16.mxu0 %v1948
        %2020 = vmatpush1.bf16.msra.mxu0 %v1947
        %2021 = vmatprep.subr.bf16.mxu0 %v1950
        %2022 = vmatpush1.bf16.msra.mxu0 %v1949
        %2023 = vmatprep.subr.bf16.mxu0 %v1952
        %2024 = vmatpush1.bf16.msra.mxu0 %v1951
        %2025 = vmatprep.subr.bf16.mxu0 %v1954
        %2026 = vmatpush1.bf16.msra.mxu0 %v1953
        %2027 = vmatprep.subr.bf16.mxu0 %v1956
        %2028 = vmatpush1.bf16.msra.mxu0 %v1955
        %2029 = vmatprep.mubr.bf16.mxu0 %v1982
        %2030 = vmatmul.mubr.bf16.gmra.mrb[0].mxu0 %v1981
        %v2031 = vpop.f32.mrb[0].mxu0
        %v2032 = vadd.f32 0.0, %v2031
        %v2033 = vpop.f32.mrb[0].mxu0
        %v2034 = vadd.f32 0.0, %v2033
        %v2035 = vpop.f32.mrb[0].mxu0
        %v2036 = vadd.f32 0.0, %v2035
        %v2037 = vpop.f32.mrb[0].mxu0
        %v2038 = vadd.f32 0.0, %v2037
        %2039 = vmatprep.mubr.bf16.mxu0 %v1985
        %2040 = vmatmul.mubr.bf16.gmra.mrb[0].mxu0 %v1984
        %v2041 = vpop.f32.mrb[0].mxu0
        %v2042 = vadd.f32 0.0, %v2041
        %v2043 = vpop.f32.mrb[0].mxu0
        %v2044 = vadd.f32 0.0, %v2043
        %v2045 = vpop.f32.mrb[0].mxu0
        %v2046 = vadd.f32 0.0, %v2045
        %v2047 = vpop.f32.mrb[0].mxu0
        %v2048 = vadd.f32 0.0, %v2047
        %2049 = vdwg.mxu0
        %2050 = vmatprep.subr.bf16.mxu0 %v1958
        %2051 = vmatpush1.bf16.msra.mxu0 %v1957
        %2052 = vmatprep.subr.bf16.mxu0 %v1960
        %2053 = vmatpush1.bf16.msra.mxu0 %v1959
        %2054 = vmatprep.subr.bf16.mxu0 0
        %2055 = vmatpush1.bf16.msra.mxu0 0
        %2056 = vmatprep.subr.bf16.mxu0 0
        %2057 = vmatpush1.bf16.msra.mxu0 0
        %2058 = vmatprep.subr.bf16.mxu0 0
        %2059 = vmatpush1.bf16.msra.mxu0 0
        %2060 = vmatprep.subr.bf16.mxu0 0
        %2061 = vmatpush1.bf16.msra.mxu0 0
        %2062 = vmatprep.subr.bf16.mxu0 0
        %2063 = vmatpush1.bf16.msra.mxu0 0
        %2064 = vmatprep.subr.bf16.mxu0 0
        %2065 = vmatpush1.bf16.msra.mxu0 0
        %2066 = vmatprep.subr.bf16.mxu0 0
        %2067 = vmatpush1.bf16.msra.mxu0 0
        %2068 = vmatprep.subr.bf16.mxu0 0
        %2069 = vmatpush1.bf16.msra.mxu0 0
        %2070 = vmatprep.subr.bf16.mxu0 0
        %2071 = vmatpush1.bf16.msra.mxu0 0
        %2072 = vmatprep.subr.bf16.mxu0 0
        %2073 = vmatpush1.bf16.msra.mxu0 0
        %2074 = vmatprep.subr.bf16.mxu0 0
        %2075 = vmatpush1.bf16.msra.mxu0 0
        %2076 = vmatprep.subr.bf16.mxu0 0
        %2077 = vmatpush1.bf16.msra.mxu0 0
        %2078 = vmatprep.subr.bf16.mxu0 0
        %2079 = vmatpush1.bf16.msra.mxu0 0
        %2080 = vmatprep.subr.bf16.mxu0 0
        %2081 = vmatpush1.bf16.msra.mxu0 0
        %2082 = vmatprep.mubr.bf16.mxu0 0
        %2083 = vmatmul.mubr.bf16.gmra.mrb[0].mxu0 %v1992
        %v2084 = vpop.f32.mrb[0].mxu0
        %v2085 = vadd.f32 %v2032, %v2084
        %v2086 = vpop.f32.mrb[0].mxu0
        %v2087 = vadd.f32 %v2034, %v2086
        %v2088 = vpop.f32.mrb[0].mxu0
        %v2089 = vadd.f32 %v2036, %v2088
        %v2090 = vpop.f32.mrb[0].mxu0
        %v2091 = vadd.f32 %v2038, %v2090
        %2092 = vmatprep.mubr.bf16.mxu0 0
        %2093 = vmatmul.mubr.bf16.gmra.mrb[0].mxu0 %v1995
        %v2094 = vpop.f32.mrb[0].mxu0
        %v2095 = vadd.f32 %v2042, %v2094
        %v2096 = vpop.f32.mrb[0].mxu0
        %v2097 = vadd.f32 %v2044, %v2096
        %v2098 = vpop.f32.mrb[0].mxu0
        %v2099 = vadd.f32 %v2046, %v2098
        %v2100 = vpop.f32.mrb[0].mxu0
        %v2101 = vadd.f32 %v2048, %v2100
        %2102 = vdwg.mxu0
        %v2103 = vld [vmem:[%s7] sm:$0xff]
        %v2104 = vld [vmem:[%s7 + $0x8] sm:$0xff]
        %v2105 = vld [vmem:[%s7 + $0x10] sm:$0xff]
        %v2106 = vld [vmem:[%s7 + $0x18] sm:$0xff]
        %2108 = vset.pattern.permute.xlu0 0
        %2109 = vperm.xlu0 %2108, %v2103
        %v2110 = vpop.permute.xlu0 %2109
        %2113 = vset.pattern.permute.xlu0 0
        %2114 = vperm.xlu0 %2113, %v2104
        %v2115 = vpop.permute.xlu0 %2114
        %2118 = vset.pattern.permute.xlu0 0
        %2119 = vperm.xlu0 %2118, %v2105
        %v2120 = vpop.permute.xlu0 %2119
        %2123 = vset.pattern.permute.xlu0 0
        %2124 = vperm.xlu0 %2123, %v2106
        %v2125 = vpop.permute.xlu0 %2124
        %v2127 = vmul.f32 %v2085, %v2110
        %v2128 = vmul.f32 %v2087, %v2110
        %v2129 = vmul.f32 %v2089, %v2115
        %v2130 = vmul.f32 %v2091, %v2115
        %v2131 = vmul.f32 %v2095, %v2120
        %v2132 = vmul.f32 %v2097, %v2120
        %v2133 = vmul.f32 %v2099, %v2125
        %v2134 = vmul.f32 %v2101, %v2125
        %v2135 = vld [vmem:[%s8] sm:$0xff]
        %v2136 = vld [vmem:[%s8 + $0x8] sm:$0xff]
        %v2137 = vld [vmem:[%s8 + $0x10] sm:$0xff]
        %v2138 = vld [vmem:[%s8 + $0x18] sm:$0xff]
        %2140 = vset.pattern.permute.xlu0 0
        %2141 = vperm.xlu0 %2140, %v2135
        %v2142 = vpop.permute.xlu0 %2141
        %2145 = vset.pattern.permute.xlu0 0
        %2146 = vperm.xlu0 %2145, %v2136
        %v2147 = vpop.permute.xlu0 %2146
        %2150 = vset.pattern.permute.xlu0 0
        %2151 = vperm.xlu0 %2150, %v2137
        %v2152 = vpop.permute.xlu0 %2151
        %2155 = vset.pattern.permute.xlu0 0
        %2156 = vperm.xlu0 %2155, %v2138
        %v2157 = vpop.permute.xlu0 %2156
        %v2159 = vadd.f32 %v2127, %v2142
        %v2160 = vadd.f32 %v2128, %v2142
        %v2161 = vadd.f32 %v2129, %v2147
        %v2162 = vadd.f32 %v2130, %v2147
        %v2163 = vadd.f32 %v2131, %v2152
        %v2164 = vadd.f32 %v2132, %v2152
        %v2165 = vadd.f32 %v2133, %v2157
        %v2166 = vadd.f32 %v2134, %v2157
        %v2167 = vadd.f32 %v2159, %v2160
        %2168 = vadd.xlane.f32.xlu0 %v2167
        %v2169 = vpop.xlane.xlu0 %2168
        %v2170 = vadd.f32 %v2161, %v2162
        %2171 = vadd.xlane.f32.xlu0 %v2170
        %v2172 = vpop.xlane.xlu0 %2171
        %v2173 = vadd.f32 %v2163, %v2164
        %2174 = vadd.xlane.f32.xlu0 %v2173
        %v2175 = vpop.xlane.xlu0 %2174
        %v2176 = vadd.f32 %v2165, %v2166
        %2177 = vadd.xlane.f32.xlu0 %v2176
        %v2178 = vpop.xlane.xlu0 %2177
        %v2179 = vmul.f32 %v2169, 0.00390625
        %v2180 = vmul.f32 %v2172, 0.00390625
        %v2181 = vmul.f32 %v2175, 0.00390625
        %v2182 = vmul.f32 %v2178, 0.00390625
        %v2183 = vld [vmem:[%s9] sm:$0xff]
        %v2184 = vld [vmem:[%s9 + $0x8] sm:$0xff]
        %v2185 = vld [vmem:[%s9 + $0x10] sm:$0xff]
        %v2186 = vld [vmem:[%s9 + $0x18] sm:$0xff]
        %v2187 = vmul.f32 %v2179, %v2183
        %v2188 = vmul.f32 %v2180, %v2184
        %v2189 = vmul.f32 %v2181, %v2185
        %v2190 = vmul.f32 %v2182, %v2186
        %vm2191 = vcmask 15360
        %v2192 = vsel %vm2191, %v2187, 0.0
        %v2193 = vsel %vm2191, %v2188, 0.0
        %v2194 = vadd.f32 %v2192, %v2193
        %v2195 = vsel %vm2191, %v2189, 0.0
        %v2196 = vadd.f32 %v2194, %v2195
        %v2197 = vsel %vm2191, %v2190, 0.0
        %v2198 = vadd.f32 %v2196, %v2197
        %v2199 = vrot.slane %v2198, 4
        %v2200 = vadd.f32 %v2198, %v2199
        %v2201 = vrot.slane %v2200, 2
        %v2202 = vadd.f32 %v2200, %v2201
        %v2203 = vrot.slane %v2202, 1
        %v2204 = vadd.f32 %v2202, %v2203
        %v2205 = vmax.f32 %v2204, 0.0
        %v2206 = vld [vmem:[%s10] sm:$0xff]
        %v2207 = vld [vmem:[%s10 + $0x8] sm:$0xff]
        %v2208 = vld [vmem:[%s10 + $0x10] sm:$0xff]
        %v2209 = vld [vmem:[%s10 + $0x18] sm:$0xff]
        %v2210 = vmul.f32 %v2206, %v2205
        %v2211 = vmul.f32 %v2207, %v2205
        %v2212 = vmul.f32 %v2208, %v2205
        %v2213 = vmul.f32 %v2209, %v2205
        %v2214 = vsel %vm2191, %v2210, 0.0
        %2215 = vadd.xlane.f32.xlu0 %v2214
        %v2216 = vpop.xlane.xlu0 %2215
        %v2217 = vsel %vm2191, %v2211, 0.0
        %2218 = vadd.xlane.f32.xlu0 %v2217
        %v2219 = vpop.xlane.xlu0 %2218
        %v2220 = vsel %vm2191, %v2212, 0.0
        %2221 = vadd.xlane.f32.xlu0 %v2220
        %v2222 = vpop.xlane.xlu0 %2221
        %v2223 = vsel %vm2191, %v2213, 0.0
        %2224 = vadd.xlane.f32.xlu0 %v2223
        %v2225 = vpop.xlane.xlu0 %2224
        %v2226 = vxor.u32 %v2216, 2147483648
        %v2227 = vxor.u32 %v2219, 2147483648
        %v2228 = vxor.u32 %v2222, 2147483648
        %v2229 = vxor.u32 %v2225, 2147483648
        %v2230 = vmul.f32 %v2226, 1.442695
        %v2231 = vpow.pop %v2230
        %v2232 = vmul.f32 %v2227, 1.442695
        %v2233 = vpow.pop %v2232
        %v2234 = vmul.f32 %v2228, 1.442695
        %v2235 = vpow.pop %v2234
        %v2236 = vmul.f32 %v2229, 1.442695
        %v2237 = vpow.pop %v2236
        %v2238 = vadd.f32 %v2231, 1.0
        %v2239 = vadd.f32 %v2233, 1.0
        %v2240 = vadd.f32 %v2235, 1.0
        %v2241 = vadd.f32 %v2237, 1.0
        %v2242 = vrcp.pop %v2238
        %v2243 = vmul.f32 1.0, %v2242
        %v2244 = vrcp.pop %v2239
        %v2245 = vmul.f32 1.0, %v2244
        %v2246 = vrcp.pop %v2240
        %v2247 = vmul.f32 1.0, %v2246
        %v2248 = vrcp.pop %v2241
        %v2249 = vmul.f32 1.0, %v2248
        %v2250 = vmul.f32 %v2159, %v2243
        %v2251 = vmul.f32 %v2160, %v2243
        %v2252 = vmul.f32 %v2161, %v2245
        %v2253 = vmul.f32 %v2162, %v2245
        %v2254 = vmul.f32 %v2163, %v2247
        %v2255 = vmul.f32 %v2164, %v2247
        %v2256 = vmul.f32 %v2165, %v2249
        %v2257 = vmul.f32 %v2166, %v2249
        %v2258 = vadd.f32 %v2250, %v792
        %v2259 = vadd.f32 %v2251, %v794
        %v2260 = vadd.f32 %v2252, %v796
        %v2261 = vadd.f32 %v2253, %v798
        %v2262 = vadd.f32 %v2254, %v802
        %v2263 = vadd.f32 %v2255, %v804
        %v2264 = vadd.f32 %v2256, %v806
        %v2265 = vadd.f32 %v2257, %v808
        %v2266 = vmax.f32 %v2258, 0.0
        %v2267 = vmax.f32 %v2259, 0.0
        %v2268 = vmax.f32 %v2260, 0.0
        %v2269 = vmax.f32 %v2261, 0.0
        %v2270 = vmax.f32 %v2262, 0.0
        %v2271 = vmax.f32 %v2263, 0.0
        %v2272 = vmax.f32 %v2264, 0.0
        %v2273 = vmax.f32 %v2265, 0.0
        %2274 = vst [vmem:[%s425] sm:$0xff] %v2266
        %2275 = vst [vmem:[%s425 + $0x8] sm:$0xff] %v2267
        %2276 = vst [vmem:[%s425 + $0x10] sm:$0xff] %v2268
        %2277 = vst [vmem:[%s425 + $0x18] sm:$0xff] %v2269
        %2278 = vst [vmem:[%s425 + $0x20] sm:$0xff] %v2270
        %2279 = vst [vmem:[%s425 + $0x28] sm:$0xff] %v2271
        %2280 = vst [vmem:[%s425 + $0x30] sm:$0xff] %v2272
        %2281 = vst [vmem:[%s425 + $0x38] sm:$0xff] %v2273
        %s2282 = sand.u32 %s270, 1
        %s2283 = scalar_lea.sflag [#allocation6], %s2282
        %s2284 = sand.u32 %s270, 1
        %s2285 = smul.addr %s2284, 64
        %s2286 = scalar_lea.vmem [#allocation7], %s2285
        // Predicated region
        $region92: #{tpu_custom_call.1} parent=82 // pred_check
          %p2287 = pneg %p280
        $region93: #{tpu_custom_call.1} parent=82 // pred_check_branch
          %2289 = sbr.rel (%p2287) target = $region95
        $region94: #{tpu_custom_call.1} parent=82 // pred_region
          %s2290 = smul.u32 2, %s26
          %s2292 = ssub.s32 1024, 1024
          %2293 = vsyncadd %s2283, %s2292
          %s2294 = smul.addr %s2290, 128
          %s2295 = scalar_lea.hbm %s11, %s2294
          %s2296 = sshll.u32 %s2286, 4
          %s2297 = int_to_ptr.vmem [resolvable:$true] %s2296
          %2302 = dma.vmem_to_hbm [thread:$0]  %s2297, 1024, %s2295, %s2283, 256, 512, 16
        $region95: #{tpu_custom_call.1} parent=82 // pred_fallthru
          _
      $region83: #{tpu_custom_call.1} parent=5 // pred_fallthru
        _
      %p2303 = scmp.le.s32.totalorder 2, %s21
      // Predicated region
      $region96: #{tpu_custom_call.1} parent=5 // pred_check
        %p2304 = pneg %p2303
      $region97: #{tpu_custom_call.1} parent=5 // pred_check_branch
        %2306 = sbr.rel (%p2304) target = $region99
      $region98: #{tpu_custom_call.1} parent=5 // pred_region
        %s2307 = ssub.s32 %s21, 2
        // Predicated region
        $region100: #{tpu_custom_call.1} parent=98 // pred_check
          %p2308 = pneg %p286
        $region101: #{tpu_custom_call.1} parent=98 // pred_check_branch
          %2310 = sbr.rel (%p2308) target = $region103
        $region102: #{tpu_custom_call.1} parent=98 // pred_region
          %s2311 = sand.u32 %s271, 1
          %s2312 = scalar_lea.sflag [#allocation6], %s2311
          %s2313 = sand.u32 %s271, 1
          %s2314 = smul.addr %s2313, 64
          %s2315 = scalar_lea.vmem [#allocation7], %s2314
          %2316 = dma.done %s2312, 1024
        $region103: #{tpu_custom_call.1} parent=98 // pred_fallthru
          _
      $region99: #{tpu_custom_call.1} parent=5 // pred_fallthru
        _
    $region6: #{tpu_custom_call.1} parent=1 // loop_footer
      %s25 = sadd.s32 1, %s21
    $region7: #{tpu_custom_call.1} parent=1 // loop_footer_branch
      %20 = sbr.rel target = $region3
    $region8: #{tpu_custom_call.1} parent=1 // loop_exit
      _
    %2317 = vsyncpa [#allocation5], 1
    %s2318 = scalar_lea.sflag [#allocation5], 1
    %2319 = vsyncpa %s2318, 1
    %2320 = vsyncpa [#allocation6], 1
    %s2321 = scalar_lea.sflag [#allocation6], 1
    %2322 = vsyncpa %s2321, 1

</llo_original>
